<compile_context>
chip_gen: v6e
topology: v6e:2x2x1
jax: 0.10.0
libtpu: 0.0.40
codegen_flags: <defaults>
</compile_context>

<pallas_src>
import functools

import jax
import jax.numpy as jnp
from jax.experimental import pallas as pl
from jax.experimental.pallas import tpu as pltpu

IN_DIM = 784        # 28*28 flattened image
HID_DIM = 200       # real hidden width (LayerNorm is over these 200 features)
HID_PAD = 256       # hidden width padded to a multiple of 128 lanes
OUT_DIM = 1
LN_EPS = 1e-5
LEAK = 0.02


def _disc_kernel(x_ref, w1_ref, b1_ref, w2g_ref, c_ref, o_ref):
    # ---- Linear(784 -> 200, padded to 256) on the MXU ------------------------
    # f32 x is DMA'd straight from HBM; cast to bf16 here (VPU has slack, the
    # kernel is DMA-bound) so the MXU runs at native bf16 rate with f32 accum.
    xb = x_ref[...].astype(jnp.bfloat16)
    h = jnp.dot(xb, w1_ref[...], preferred_element_type=jnp.float32)
    h = h + b1_ref[...]                                    # (bt, 256); padded lanes stay 0

    # ---- LeakyReLU(0.02) ------------------------------------------------------
    h = jnp.where(h >= 0.0, h, LEAK * h)                   # LeakyReLU(0) == 0 on pads

    # ---- LayerNorm statistics over the real 200 features ----------------------
    # Padded lanes of h are exactly zero (zero-padded W1 cols / b1), so summing
    # over all 256 lanes and dividing by 200 gives exact mean / E[h^2].
    inv_n = 1.0 / HID_DIM
    mean = jnp.sum(h, axis=-1, keepdims=True) * inv_n       # (bt, 1)
    m2 = jnp.sum(h * h, axis=-1, keepdims=True) * inv_n     # (bt, 1)
    var = m2 - mean * mean
    inv_std = jax.lax.rsqrt(var + LN_EPS)
    hn = (h - mean) * inv_std                                # (bt, 256)
    # gamma/beta are folded into w2g / c (LN affine commutes through the linear).

    # ---- Linear(200 -> 1), lane-dense: (1, H) @ (bt, H)^T -> (1, bt) ----------
    # Padded lanes of hn are nonzero (-mean*inv_std) but w2g is zero there.
    y = jax.lax.dot_general(
        w2g_ref[...], hn,
        dimension_numbers=(((1,), (1,)), ((), ())),
        preferred_element_type=jnp.float32,
    )                                                        # (1, bt)
    y = y + c_ref[...]                                       # (1,1) broadcast

    # ---- Sigmoid (tanh form: runs on the EUP, no inf intermediate) ------------
    o = 0.5 * (jnp.tanh(0.5 * y) + 1.0)
    o_ref[...] = o.reshape(o_ref.shape).astype(o_ref.dtype)


def init_params(key):
    """PyTorch-layout params (uniform +/- 1/sqrt(fan_in), LN defaults)."""
    k1, k2, k3, k4 = jax.random.split(key, 4)
    bound1 = 1.0 / jnp.sqrt(jnp.float32(IN_DIM))
    bound2 = 1.0 / jnp.sqrt(jnp.float32(HID_DIM))
    w1 = jax.random.uniform(k1, (HID_DIM, IN_DIM), jnp.float32, -bound1, bound1)
    b1 = jax.random.uniform(k2, (HID_DIM,), jnp.float32, -bound1, bound1)
    gamma = jnp.ones((HID_DIM,), jnp.float32)
    beta = jnp.zeros((HID_DIM,), jnp.float32)
    w2 = jax.random.uniform(k3, (OUT_DIM, HID_DIM), jnp.float32, -bound2, bound2)
    b2 = jax.random.uniform(k4, (OUT_DIM,), jnp.float32, -bound2, bound2)
    return (w1, b1, gamma, beta, w2, b2)


def prepare_params(params):
    """Kernel layout:
       * W1 transposed to (in, out), hidden padded 200->256 with zeros, cast bf16.
       * LayerNorm affine folded into the output head:
           w2g = w2 * gamma   (zero-padded to 256 lanes)
           c   = dot(w2, beta) + b2   (scalar)
    """
    w1, b1, gamma, beta, w2, b2 = params
    w1_p = jnp.zeros((IN_DIM, HID_PAD), jnp.float32).at[:, :HID_DIM].set(w1.T)
    w1_p = w1_p.astype(jnp.bfloat16)
    b1_p = jnp.zeros((1, HID_PAD), jnp.float32).at[:, :HID_DIM].set(b1.reshape(1, -1))
    w2g = w2 * gamma.reshape(1, -1)                              # (1, 200)
    w2g_p = jnp.zeros((1, HID_PAD), jnp.float32).at[:, :HID_DIM].set(w2g)
    c_p = (jnp.sum(w2 * beta.reshape(1, -1)) + b2[0]).reshape(1, 1).astype(jnp.float32)
    return (w1_p, b1_p, w2g_p, c_p)


def _effective_tile(B, requested):
    """Pick the batch tile (static Python ints at trace time):
       * multiple of 128 (lane-dense output row),
       * as large as requested (default 1024) but clamped so the grid keeps
         >= 2 steps when B > 128 (shards across v7x's two TensorCores)."""
    requested = max(128, (requested // 128) * 128)
    if B <= 128:
        return 128
    half = ((-(-B // 2)) + 127) // 128 * 128      # round_up(cdiv(B, 2), 128)
    return max(128, min(requested, half))


@functools.partial(jax.jit, static_argnames=("batch_tile",))
def discriminator_forward(x, kernel_params, *, batch_tile=1024):
    """x: (B, 784) float32. Returns (B, 1) float32 in [0, 1]."""
    w1_p, b1_p, w2g_p, c_p = kernel_params
    B = x.shape[0]
    bt = _effective_tile(B, batch_tile)
    n_tiles = pl.cdiv(B, bt)

    # No wrapper-side cast or pad of x: f32 rows are DMA'd directly; the ragged
    # last block (if B % bt != 0) reads unspecified rows that are row-locally
    # garbage and sliced off below.
    x = x.astype(jnp.float32)

    out = pl.pallas_call(
        _disc_kernel,
        out_shape=jax.ShapeDtypeStruct((n_tiles, 1, bt), jnp.float32),
        grid_spec=pltpu.PrefetchScalarGridSpec(
            num_scalar_prefetch=0,
            grid=(n_tiles,),
            in_specs=[
                pl.BlockSpec((bt, IN_DIM), lambda i: (i, 0)),      # x tile (f32)
                pl.BlockSpec((IN_DIM, HID_PAD), lambda i: (0, 0)),  # W1 (bf16)
                pl.BlockSpec((1, HID_PAD), lambda i: (0, 0)),       # b1
                pl.BlockSpec((1, HID_PAD), lambda i: (0, 0)),       # w2 * gamma
                pl.BlockSpec((1, 1), lambda i: (0, 0)),             # c = w2@beta + b2
            ],
            out_specs=pl.BlockSpec((1, 1, bt), lambda i: (i, 0, 0)),
        ),
        compiler_params=pltpu.CompilerParams(
            # Batch axis is embarrassingly parallel; with >= 2 grid steps this
            # shards across v7x's two TensorCores.
            dimension_semantics=("parallel",),
            # v5e's scoped-VMEM default (16 MiB) is tight at large tiles; 48 MiB
            # still leaves headroom on v7x's 64 MiB physical VMEM.
            vmem_limit_bytes=48 * 1024 * 1024,
        ),
    )(x, w1_p, b1_p, w2g_p, c_p)

    return out.reshape(n_tiles * bt, 1)[:B]


def reference_forward(x, params):
    """PyTorch-faithful f32 reference."""
    w1, b1, gamma, beta, w2, b2 = params
    h = x @ w1.T + b1
    h = jnp.where(h >= 0, h, LEAK * h)
    mean = jnp.mean(h, axis=-1, keepdims=True)
    var = jnp.mean((h - mean) ** 2, axis=-1, keepdims=True)
    h = (h - mean) * jax.lax.rsqrt(var + LN_EPS) * gamma + beta
    y = h @ w2.T + b2
    return jax.nn.sigmoid(y)


def reference_forward_bf16(x, params):
    """Same math but with the first matmul in bf16 (matches the kernel's MXU path)."""
    w1, b1, gamma, beta, w2, b2 = params
    h = jnp.dot(x.astype(jnp.bfloat16), w1.T.astype(jnp.bfloat16),
                preferred_element_type=jnp.float32) + b1
    h = jnp.where(h >= 0, h, LEAK * h)
    mean = jnp.mean(h, axis=-1, keepdims=True)
    var = jnp.mean((h - mean) ** 2, axis=-1, keepdims=True)
    h = (h - mean) * jax.lax.rsqrt(var + LN_EPS) * gamma + beta
    y = h @ w2.T + b2
    return jax.nn.sigmoid(y)


# TODO(synk): BCELoss / Adam optimizer / training loop / plotting from the
# PyTorch class are training-time utilities, not part of the forward pass, and
# are intentionally not translated.

if __name__ == "__main__":
    key = jax.random.PRNGKey(0)
    pkey, xkey = jax.random.split(key)
    params = init_params(pkey)
    kparams = prepare_params(params)

    # B deliberately not a tile multiple: exercises the ragged last block, and
    # the tile clamp yields 2 grid steps (both v7x TensorCores get work).
    B = 300
    x = jax.random.uniform(xkey, (B, IN_DIM), jnp.float32)

    out = discriminator_forward(x, kparams)
    out = jax.block_until_ready(out)
    assert out.shape == (B, OUT_DIM)
    assert bool(jnp.all(jnp.isfinite(out)))

    ref_bf16 = reference_forward_bf16(x, params)   # kernel-matched precision
    ref_f32 = reference_forward(x, params)         # PyTorch-faithful f32
    assert jnp.allclose(out, ref_bf16, atol=1e-3, rtol=1e-3), "mismatch vs bf16-matched reference"
    assert jnp.allclose(out, ref_f32, atol=2e-2, rtol=2e-2), "mismatch vs f32 reference"

    print("KERNEL_OK")
</pallas_src>

<mosaic_0001>
module attributes {stable_mosaic.version = 11 : i64} {
  func.func @_disc_kernel(%arg0: i32, %arg1: memref<256x784xf32, #tpu.memory_space<vmem>>, %arg2: memref<784x256xbf16, #tpu.memory_space<vmem>>, %arg3: memref<1x256xf32, #tpu.memory_space<vmem>>, %arg4: memref<1x256xf32, #tpu.memory_space<vmem>>, %arg5: memref<1x1xf32, #tpu.memory_space<vmem>>, %arg6: memref<1x1x256xf32, #tpu.memory_space<vmem>>) attributes {dimension_semantics = [#tpu.dimension_semantics<parallel>], iteration_bounds = array<i64: 2>, scalar_prefetch = 0 : i64, scratch_operands = 0 : i64, tpu.core_type = #tpu.core_type<tc>, window_params = [{transform_indices = @transform_0, window_bounds = array<i64: 256, 784>}, {pipeline_mode = #tpu.pipeline_mode<synchronous>, transform_indices = @transform_1, window_bounds = array<i64: 784, 256>}, {pipeline_mode = #tpu.pipeline_mode<synchronous>, transform_indices = @transform_2, window_bounds = array<i64: 1, 256>}, {pipeline_mode = #tpu.pipeline_mode<synchronous>, transform_indices = @transform_3, window_bounds = array<i64: 1, 256>}, {pipeline_mode = #tpu.pipeline_mode<synchronous>, transform_indices = @transform_4, window_bounds = array<i64: 1, 1>}, {transform_indices = @transform_5, window_bounds = array<i64: 1, 1, 256>}]} {
    %c0 = arith.constant 0 : index
    %c0_0 = arith.constant 0 : index
    %0 = vector.load %arg1[%c0, %c0_0] : memref<256x784xf32, #tpu.memory_space<vmem>>, vector<256x784xf32>
    %1 = arith.truncf %0 : vector<256x784xf32> to vector<256x784xbf16>
    %c0_1 = arith.constant 0 : index
    %c0_2 = arith.constant 0 : index
    %2 = vector.load %arg2[%c0_1, %c0_2] : memref<784x256xbf16, #tpu.memory_space<vmem>>, vector<784x256xbf16>
    %cst = arith.constant dense<0.000000e+00> : vector<256x256xf32>
    %3 = tpu.matmul %1, %2, %cst {dimension_numbers = #tpu.dot_dimension_numbers<[1], [0], [0], [1], [0, 0, 1, 1], [], []>} : vector<256x784xbf16>, vector<784x256xbf16>, vector<256x256xf32> -> vector<256x256xf32>
    %c0_3 = arith.constant 0 : index
    %c0_4 = arith.constant 0 : index
    %4 = vector.load %arg3[%c0_3, %c0_4] : memref<1x256xf32, #tpu.memory_space<vmem>>, vector<1x256xf32>
    %5 = vector.broadcast %4 : vector<1x256xf32> to vector<256x256xf32>
    %6 = arith.addf %3, %5 : vector<256x256xf32>
    %cst_5 = arith.constant 0.000000e+00 : f32
    %7 = vector.broadcast %cst_5 : f32 to vector<256x256xf32>
    %8 = arith.cmpf oge, %6, %7 : vector<256x256xf32>
    %cst_6 = arith.constant 2.000000e-02 : f32
    %9 = vector.broadcast %cst_6 : f32 to vector<256x256xf32>
    %10 = arith.mulf %9, %6 : vector<256x256xf32>
    %11 = arith.select %8, %6, %10 : vector<256x256xi1>, vector<256x256xf32>
    %cst_7 = arith.constant dense<0.000000e+00> : vector<256xf32>
    %12 = vector.multi_reduction <add>, %11, %cst_7 [1] : vector<256x256xf32> to vector<256xf32>
    %13 = vector.shape_cast %12 : vector<256xf32> to vector<256x1xf32>
    %cst_8 = arith.constant 5.000000e-03 : f32
    %14 = vector.broadcast %cst_8 : f32 to vector<256x1xf32>
    %15 = arith.mulf %13, %14 : vector<256x1xf32>
    %16 = arith.mulf %11, %11 : vector<256x256xf32>
    %cst_9 = arith.constant dense<0.000000e+00> : vector<256xf32>
    %17 = vector.multi_reduction <add>, %16, %cst_9 [1] : vector<256x256xf32> to vector<256xf32>
    %18 = vector.shape_cast %17 : vector<256xf32> to vector<256x1xf32>
    %cst_10 = arith.constant 5.000000e-03 : f32
    %19 = vector.broadcast %cst_10 : f32 to vector<256x1xf32>
    %20 = arith.mulf %18, %19 : vector<256x1xf32>
    %21 = arith.mulf %15, %15 : vector<256x1xf32>
    %22 = arith.subf %20, %21 : vector<256x1xf32>
    %cst_11 = arith.constant 9.99999974E-6 : f32
    %23 = vector.broadcast %cst_11 : f32 to vector<256x1xf32>
    %24 = arith.addf %22, %23 : vector<256x1xf32>
    %25 = math.rsqrt %24 : vector<256x1xf32>
    %26 = vector.broadcast %15 : vector<256x1xf32> to vector<256x256xf32>
    %27 = arith.subf %11, %26 : vector<256x256xf32>
    %28 = vector.broadcast %25 : vector<256x1xf32> to vector<256x256xf32>
    %29 = arith.mulf %27, %28 : vector<256x256xf32>
    %c0_12 = arith.constant 0 : index
    %c0_13 = arith.constant 0 : index
    %30 = vector.load %arg4[%c0_12, %c0_13] : memref<1x256xf32, #tpu.memory_space<vmem>>, vector<1x256xf32>
    %cst_14 = arith.constant dense<0.000000e+00> : vector<1x256xf32>
    %31 = tpu.matmul %30, %29, %cst_14 {dimension_numbers = #tpu.dot_dimension_numbers<[1], [1], [0], [0], [0, 0, 1, 0], [], []>} : vector<1x256xf32>, vector<256x256xf32>, vector<1x256xf32> -> vector<1x256xf32>
    %c0_15 = arith.constant 0 : index
    %c0_16 = arith.constant 0 : index
    %32 = vector.load %arg5[%c0_15, %c0_16] : memref<1x1xf32, #tpu.memory_space<vmem>>, vector<1x1xf32>
    %33 = vector.broadcast %32 : vector<1x1xf32> to vector<1x256xf32>
    %34 = arith.addf %31, %33 : vector<1x256xf32>
    %cst_17 = arith.constant 5.000000e-01 : f32
    %35 = vector.broadcast %cst_17 : f32 to vector<1x256xf32>
    %36 = arith.mulf %35, %34 : vector<1x256xf32>
    %37 = math.tanh %36 : vector<1x256xf32>
    %cst_18 = arith.constant 1.000000e+00 : f32
    %38 = vector.broadcast %cst_18 : f32 to vector<1x256xf32>
    %39 = arith.addf %37, %38 : vector<1x256xf32>
    %cst_19 = arith.constant 5.000000e-01 : f32
    %40 = vector.broadcast %cst_19 : f32 to vector<1x256xf32>
    %41 = arith.mulf %40, %39 : vector<1x256xf32>
    %42 = vector.shape_cast %41 : vector<1x256xf32> to vector<1x1x256xf32>
    %c0_20 = arith.constant 0 : index
    %c0_21 = arith.constant 0 : index
    %c0_22 = arith.constant 0 : index
    %43 = vector.load %arg6[%c0_20, %c0_21, %c0_22] : memref<1x1x256xf32, #tpu.memory_space<vmem>>, vector<1x1x256xf32>
    tpu.vector_store %arg6[%c0_20, %c0_21, %c0_22], %42 {strides = array<i32>} : memref<1x1x256xf32, #tpu.memory_space<vmem>>, vector<1x1x256xf32>,
    return
  }
  func.func @transform_0(%arg0: i32) -> (i32, i32) {
    %c0_i32 = arith.constant 0 : i32
    %c0_i32_0 = arith.constant 0 : i32
    return %arg0, %c0_i32 : i32, i32
  }
  func.func @transform_1(%arg0: i32) -> (i32, i32) {
    %c0_i32 = arith.constant 0 : i32
    %c0_i32_0 = arith.constant 0 : i32
    %c0_i32_1 = arith.constant 0 : i32
    return %c0_i32, %c0_i32_0 : i32, i32
  }
  func.func @transform_2(%arg0: i32) -> (i32, i32) {
    %c0_i32 = arith.constant 0 : i32
    %c0_i32_0 = arith.constant 0 : i32
    %c0_i32_1 = arith.constant 0 : i32
    return %c0_i32, %c0_i32_0 : i32, i32
  }
  func.func @transform_3(%arg0: i32) -> (i32, i32) {
    %c0_i32 = arith.constant 0 : i32
    %c0_i32_0 = arith.constant 0 : i32
    %c0_i32_1 = arith.constant 0 : i32
    return %c0_i32, %c0_i32_0 : i32, i32
  }
  func.func @transform_4(%arg0: i32) -> (i32, i32) {
    %c0_i32 = arith.constant 0 : i32
    %c0_i32_0 = arith.constant 0 : i32
    %c0_i32_1 = arith.constant 0 : i32
    return %c0_i32, %c0_i32_0 : i32, i32
  }
  func.func @transform_5(%arg0: i32) -> (i32, i32, i32) {
    %c0_i32 = arith.constant 0 : i32
    %c0_i32_0 = arith.constant 0 : i32
    %c0_i32_1 = arith.constant 0 : i32
    return %arg0, %c0_i32, %c0_i32_0 : i32, i32, i32
  }
}

</mosaic_0001>

<llo_original>
// kernel: discriminator_forward.1
$region0: #{discriminator_forward.1}
  #allocation0 [shape = 'u32[]', space=smem, size = 0x4, offset = 0x4, fixed_abs, tag = 'smem constant byte address 0x4 - core index']
  #allocation1 [shape = 'u32[144,128]{1,0:T(1,128)}', space=vmem, size = 0x12000, scoped, tag = 'internal scratch']
  #allocation2 [shape = 'f32[1,1]{1,0:T(1,128)S(1)}', space=vmem, size = 0x200, scoped, tag = 'scoped memory for discriminator_forward.1']
  %s0 = inlined_call_operand.hbm [shape: f32[300,784], index: 0, kind: input, shape index: {}]
  %s1 = inlined_call_operand.hbm [shape: bf16[784,256], index: 1, kind: input, shape index: {}]
  %s2 = inlined_call_operand.hbm [shape: f32[1,256], index: 2, kind: input, shape index: {}]
  %s3 = inlined_call_operand.hbm [shape: f32[1,256], index: 3, kind: input, shape index: {}]
  %s4 = inlined_call_operand.<no memory space> [shape: f32[1,1], index: 4, kind: input, shape index: {}]
  %s5 = inlined_call_operand.vmem [shape: f32[2,1,256], index: 5, kind: output, shape index: {}]
  %s6 = sld [smem:[#allocation0]]
  $region69: #{discriminator_forward.1} parent=0
    _
  %s8 = ssub.s32 1, %s6
  %s9 = scalar_select 0, %s8, %s6
  %v10 = vstv %s4
  %11 = vst [vmem:[#allocation2] sm:$0x1] %v10
  $region1: #{discriminator_forward.1} parent=0
    #allocation3 [shape = 'u8[1835008]{0}', space=vmem, size = 0x1c0000, scoped, tag = 'input window, operand 0']
    #allocation4 [shape = 's32[2]{0}', space=sflag, size = 0x8, scoped, tag = 'scoped memory for discriminator_forward.1']
    #allocation5 [shape = 'u8[401408]{0}', space=vmem, size = 0x62000, scoped, tag = 'input window, operand 1, single buffered']
    #allocation6 [shape = 's32[1]{0}', space=sflag, size = 0x4, scoped, tag = 'scoped memory for discriminator_forward.1']
    #allocation7 [shape = 'u8[1024]{0}', space=vmem, size = 0x400, scoped, tag = 'input window, operand 2, single buffered']
    #allocation8 [shape = 'u8[1024]{0}', space=vmem, size = 0x400, scoped, tag = 'input window, operand 3, single buffered']
    #allocation9 [shape = 's32[1]{0}', space=sflag, size = 0x4, scoped, tag = 'scoped memory for discriminator_forward.1']
    %12 = vsyncpa [#allocation4], 0
    %s13 = scalar_lea.sflag [#allocation4], 1
    %14 = vsyncpa %s13, 0
    %15 = vsyncpa [#allocation6], 0
    %16 = vsyncpa [#allocation9], 0
    loop: start=0, step=1, limit=4
    $region2: #{discriminator_forward.1} parent=1 // loop_pre_header
      _
    $region3: #{discriminator_forward.1} parent=1 // loop_header
      %s18 = sphi 0, %s22
      %p19 = scmp.ge.s32.totalorder %s18, 4
      %s28 = sphi 0, %s30
      %s31 = sphi 0, %s28
      %s32 = sphi 0, %s31
      %s48 = sphi 0, %s32
      %s52 = sphi 0, %s52
      %s54 = sphi 0, %s52
      %s55 = sphi 0, %s54
      %s69 = sphi 0, %s55
      %s73 = sphi 0, %s73
      %s75 = sphi 0, %s73
      %s76 = sphi 0, %s75
      %s90 = sphi 0, %s76
      %s94 = sphi 0, %s94
      %s96 = sphi 0, %s94
      %s97 = sphi 0, %s96
      %s111 = sphi 0, %s97
      %s115 = sphi 0, %s115
      %s117 = sphi 0, %s115
      %s118 = sphi 0, %s117
      %s132 = sphi 0, %s118
      %s138 = sphi 0, %s140
      %s141 = sphi 0, %s138
      %s142 = sphi 0, %s141
      %s158 = sphi 0, %s142
    $region4: #{discriminator_forward.1} parent=1 // loop_header_branch
      %21 = sbr.rel (%p19) target = $region8
    $region5: #{discriminator_forward.1} parent=1 // loop_body
      %s23 = ssub.s32 %s18, 1
      %s24 = ssub.s32 %s18, 2
      %s25 = sadd.s32 %s18, 1
      %s26 = ssub.s32 %s18, %s25
      %p27 = scmp.eq.s32.totalorder %s26, 0
      %s29 = sadd.s32 %s28, 1
      %s30 = scalar_select %p27, %s28, %s29
      %p33 = pneg %p27
      %p34 = scmp.eq.s32.totalorder %s18, 1
      %p35 = por %p33, %p34
      %p36 = scmp.ne.s32.totalorder %s28, %s31
      %p37 = scmp.eq.s32.totalorder %s18, 0
      %p38 = por %p36, %p37
      %p39 = scmp.ne.s32.totalorder %s28, %s31
      %p40 = scmp.eq.s32.totalorder %s23, 1
      %p41 = por %p39, %p40
      %p42 = scmp.ne.s32.totalorder %s31, %s32
      %p43 = scmp.eq.s32.totalorder %s23, 0
      %p44 = por %p42, %p43
      %p45 = scmp.ne.s32.totalorder %s31, %s32
      %p46 = scmp.eq.s32.totalorder %s24, 1
      %p47 = por %p45, %p46
      %p49 = scmp.ne.s32.totalorder %s32, %s48
      %p50 = scmp.eq.s32.totalorder %s24, 0
      %p51 = por %p49, %p50
      %s53 = sadd.s32 %s52, 1
      %p56 = scmp.eq.s32.totalorder %s18, 1
      %p57 = scmp.ne.s32.totalorder %s52, %s54
      %p58 = scmp.eq.s32.totalorder %s18, 0
      %p59 = por %p57, %p58
      %p60 = scmp.ne.s32.totalorder %s52, %s54
      %p61 = scmp.eq.s32.totalorder %s23, 1
      %p62 = por %p60, %p61
      %p63 = scmp.ne.s32.totalorder %s54, %s55
      %p64 = scmp.eq.s32.totalorder %s23, 0
      %p65 = por %p63, %p64
      %p66 = scmp.ne.s32.totalorder %s54, %s55
      %p67 = scmp.eq.s32.totalorder %s24, 1
      %p68 = por %p66, %p67
      %p70 = scmp.ne.s32.totalorder %s55, %s69
      %p71 = scmp.eq.s32.totalorder %s24, 0
      %p72 = por %p70, %p71
      %s74 = sadd.s32 %s73, 1
      %p77 = scmp.eq.s32.totalorder %s18, 1
      %p78 = scmp.ne.s32.totalorder %s73, %s75
      %p79 = scmp.eq.s32.totalorder %s18, 0
      %p80 = por %p78, %p79
      %p81 = scmp.ne.s32.totalorder %s73, %s75
      %p82 = scmp.eq.s32.totalorder %s23, 1
      %p83 = por %p81, %p82
      %p84 = scmp.ne.s32.totalorder %s75, %s76
      %p85 = scmp.eq.s32.totalorder %s23, 0
      %p86 = por %p84, %p85
      %p87 = scmp.ne.s32.totalorder %s75, %s76
      %p88 = scmp.eq.s32.totalorder %s24, 1
      %p89 = por %p87, %p88
      %p91 = scmp.ne.s32.totalorder %s76, %s90
      %p92 = scmp.eq.s32.totalorder %s24, 0
      %p93 = por %p91, %p92
      %s95 = sadd.s32 %s94, 1
      %p98 = scmp.eq.s32.totalorder %s18, 1
      %p99 = scmp.ne.s32.totalorder %s94, %s96
      %p100 = scmp.eq.s32.totalorder %s18, 0
      %p101 = por %p99, %p100
      %p102 = scmp.ne.s32.totalorder %s94, %s96
      %p103 = scmp.eq.s32.totalorder %s23, 1
      %p104 = por %p102, %p103
      %p105 = scmp.ne.s32.totalorder %s96, %s97
      %p106 = scmp.eq.s32.totalorder %s23, 0
      %p107 = por %p105, %p106
      %p108 = scmp.ne.s32.totalorder %s96, %s97
      %p109 = scmp.eq.s32.totalorder %s24, 1
      %p110 = por %p108, %p109
      %p112 = scmp.ne.s32.totalorder %s97, %s111
      %p113 = scmp.eq.s32.totalorder %s24, 0
      %p114 = por %p112, %p113
      %s116 = sadd.s32 %s115, 1
      %p119 = scmp.eq.s32.totalorder %s18, 1
      %p120 = scmp.ne.s32.totalorder %s115, %s117
      %p121 = scmp.eq.s32.totalorder %s18, 0
      %p122 = por %p120, %p121
      %p123 = scmp.ne.s32.totalorder %s115, %s117
      %p124 = scmp.eq.s32.totalorder %s23, 1
      %p125 = por %p123, %p124
      %p126 = scmp.ne.s32.totalorder %s117, %s118
      %p127 = scmp.eq.s32.totalorder %s23, 0
      %p128 = por %p126, %p127
      %p129 = scmp.ne.s32.totalorder %s117, %s118
      %p130 = scmp.eq.s32.totalorder %s24, 1
      %p131 = por %p129, %p130
      %p133 = scmp.ne.s32.totalorder %s118, %s132
      %p134 = scmp.eq.s32.totalorder %s24, 0
      %p135 = por %p133, %p134
      %s136 = ssub.s32 %s18, %s25
      %p137 = scmp.eq.s32.totalorder %s136, 0
      %s139 = sadd.s32 %s138, 1
      %s140 = scalar_select %p137, %s138, %s139
      %p143 = pneg %p137
      %p144 = scmp.eq.s32.totalorder %s18, 1
      %p145 = por %p143, %p144
      %p146 = scmp.ne.s32.totalorder %s138, %s141
      %p147 = scmp.eq.s32.totalorder %s18, 0
      %p148 = por %p146, %p147
      %p149 = scmp.ne.s32.totalorder %s138, %s141
      %p150 = scmp.eq.s32.totalorder %s23, 1
      %p151 = por %p149, %p150
      %p152 = scmp.ne.s32.totalorder %s141, %s142
      %p153 = scmp.eq.s32.totalorder %s23, 0
      %p154 = por %p152, %p153
      %p155 = scmp.ne.s32.totalorder %s141, %s142
      %p156 = scmp.eq.s32.totalorder %s24, 1
      %p157 = por %p155, %p156
      %p159 = scmp.ne.s32.totalorder %s142, %s158
      %p160 = scmp.eq.s32.totalorder %s24, 0
      %p161 = por %p159, %p160
      %p162 = scmp.le.s32.totalorder 1, %s18
      %p163 = scmp.lt.s32.totalorder %s18, 3
      %p164 = pnand %p162, %p163
      %p165 = pneg %p164
      // Predicated region
      $region9: #{discriminator_forward.1} parent=5 // pred_check
        _
      $region10: #{discriminator_forward.1} parent=5 // pred_check_branch
        %167 = sbr.rel (%p164) target = $region12
      $region11: #{discriminator_forward.1} parent=5 // pred_region
        %s168 = ssub.s32 %s18, 1
        // Predicated region
        $region13: #{discriminator_forward.1} parent=11 // pred_check
          %p169 = pneg %p65
        $region14: #{discriminator_forward.1} parent=11 // pred_check_branch
          %171 = sbr.rel (%p169) target = $region16
        $region15: #{discriminator_forward.1} parent=11 // pred_region
          %s173 = ssub.s32 12544, 12544
          %174 = vsyncadd [#allocation6], %s173
          %s175 = sshll.u32 [#allocation5], 4
          %s176 = int_to_ptr.vmem [resolvable:$true] %s175
          %181 = dma.hbm_to_vmem [thread:$0]  %s1, 12544, %s176, [#allocation6], 128, 128, 8
        $region16: #{discriminator_forward.1} parent=11 // pred_fallthru
          _
        // Predicated region
        $region17: #{discriminator_forward.1} parent=11 // pred_check
          %p182 = pneg %p86
        $region18: #{discriminator_forward.1} parent=11 // pred_check_branch
          %184 = sbr.rel (%p182) target = $region20
        $region19: #{discriminator_forward.1} parent=11 // pred_region
          %s186 = ssub.s32 32, 32
          %187 = vsyncadd [#allocation6], %s186
          %s189 = sshll.u32 [#allocation7], 4
          %s190 = int_to_ptr.vmem [resolvable:$true] %s189
          %192 = dma.hbm_to_vmem [thread:$0]  %s2, 32, %s190, [#allocation6]
        $region20: #{discriminator_forward.1} parent=11 // pred_fallthru
          _
        // Predicated region
        $region21: #{discriminator_forward.1} parent=11 // pred_check
          %p193 = pneg %p107
        $region22: #{discriminator_forward.1} parent=11 // pred_check_branch
          %195 = sbr.rel (%p193) target = $region24
        $region23: #{discriminator_forward.1} parent=11 // pred_region
          %s197 = ssub.s32 32, 32
          %198 = vsyncadd [#allocation9], %s197
          %s200 = sshll.u32 [#allocation8], 4
          %s201 = int_to_ptr.vmem [resolvable:$true] %s200
          %203 = dma.hbm_to_vmem [thread:$0]  %s3, 32, %s201, [#allocation9]
        $region24: #{discriminator_forward.1} parent=11 // pred_fallthru
          _
        // Predicated region
        $region25: #{discriminator_forward.1} parent=11 // pred_check
          %p204 = pneg %p128
        $region26: #{discriminator_forward.1} parent=11 // pred_check_branch
          %206 = sbr.rel (%p204) target = $region28
        $region27: #{discriminator_forward.1} parent=11 // pred_region
          _
        $region28: #{discriminator_forward.1} parent=11 // pred_fallthru
          _
      $region12: #{discriminator_forward.1} parent=5 // pred_fallthru
        _
      %p207 = scmp.lt.s32.totalorder %s18, 2
      // Predicated region
      $region29: #{discriminator_forward.1} parent=5 // pred_check
        %p208 = pneg %p207
      $region30: #{discriminator_forward.1} parent=5 // pred_check_branch
        %210 = sbr.rel (%p208) target = $region32
      $region31: #{discriminator_forward.1} parent=5 // pred_region
        // Predicated region
        $region33: #{discriminator_forward.1} parent=31 // pred_check
          %p211 = pneg %p38
        $region34: #{discriminator_forward.1} parent=31 // pred_check_branch
          %213 = sbr.rel (%p211) target = $region36
        $region35: #{discriminator_forward.1} parent=31 // pred_region
          %s214 = sand.u32 %s28, 1
          %s215 = scalar_lea.sflag [#allocation4], %s214
          %s216 = sand.u32 %s28, 1
          %s217 = smul.addr %s216, 1792
          %s218 = scalar_lea.vmem [#allocation3], %s217
          %s219 = smul.u32 32, %s18
          %s220 = ssub.s32 38, %s219
          %p221 = scmp.lt.s32.totalorder %s220, 32
          %s222 = scalar_select %p221, %s220, 32
          %s223 = smul.u32 128, %s222
          %s224 = smul.u32 %s223, 7
          %s226 = ssub.s32 28672, %s224
          %227 = vsyncadd %s215, %s226
          %p228 = scmp.ne.s32.totalorder 0, %s224
          %s229 = smul.addr %s219, 7
          %s230 = smul.addr %s229, 128
          %s231 = scalar_lea.hbm %s0, %s230
          %s232 = smul.u32 56, %s222
          %s233 = sshll.u32 %s218, 4
          %s234 = int_to_ptr.vmem [resolvable:$true] %s233
          %s235 = sshll.u32 %s232, 4
          %239 = dma.hbm_to_vmem [thread:$0]  (%p228), %s231, %s235, %s234, %s215, 896, 896, 56
        $region36: #{discriminator_forward.1} parent=31 // pred_fallthru
          _
      $region32: #{discriminator_forward.1} parent=5 // pred_fallthru
        _
      %p240 = scmp.le.s32.totalorder 1, %s18
      %p241 = scmp.lt.s32.totalorder %s18, 3
      %p242 = pnand %p240, %p241
      %p243 = pneg %p242
      // Predicated region
      $region37: #{discriminator_forward.1} parent=5 // pred_check
        _
      $region38: #{discriminator_forward.1} parent=5 // pred_check_branch
        %245 = sbr.rel (%p242) target = $region40
      $region39: #{discriminator_forward.1} parent=5 // pred_region
        %s246 = ssub.s32 %s18, 1
        %s247 = sand.u32 %s31, 1
        %s248 = scalar_lea.sflag [#allocation4], %s247
        %s249 = sand.u32 %s31, 1
        %s250 = smul.addr %s249, 1792
        %s251 = scalar_lea.vmem [#allocation3], %s250
        // Predicated region
        $region41: #{discriminator_forward.1} parent=39 // pred_check
          %p252 = pneg %p44
        $region42: #{discriminator_forward.1} parent=39 // pred_check_branch
          %254 = sbr.rel (%p252) target = $region44
        $region43: #{discriminator_forward.1} parent=39 // pred_region
          %255 = dma.done %s248, 28672
        $region44: #{discriminator_forward.1} parent=39 // pred_fallthru
          _
        // Predicated region
        $region45: #{discriminator_forward.1} parent=39 // pred_check
          %p256 = pneg %p65
        $region46: #{discriminator_forward.1} parent=39 // pred_check_branch
          %258 = sbr.rel (%p256) target = $region48
        $region47: #{discriminator_forward.1} parent=39 // pred_region
          %259 = dma.done [#allocation6], 12544
        $region48: #{discriminator_forward.1} parent=39 // pred_fallthru
          _
        // Predicated region
        $region49: #{discriminator_forward.1} parent=39 // pred_check
          %p260 = pneg %p86
        $region50: #{discriminator_forward.1} parent=39 // pred_check_branch
          %262 = sbr.rel (%p260) target = $region52
        $region51: #{discriminator_forward.1} parent=39 // pred_region
          %263 = dma.done [#allocation6], 32
        $region52: #{discriminator_forward.1} parent=39 // pred_fallthru
          _
        // Predicated region
        $region53: #{discriminator_forward.1} parent=39 // pred_check
          %p264 = pneg %p107
        $region54: #{discriminator_forward.1} parent=39 // pred_check_branch
          %266 = sbr.rel (%p264) target = $region56
        $region55: #{discriminator_forward.1} parent=39 // pred_region
          %267 = dma.done [#allocation9], 32
        $region56: #{discriminator_forward.1} parent=39 // pred_fallthru
          _
        %s268 = sand.u32 %s31, 1
        %s269 = scalar_lea.sflag [#allocation4], %s268
        %s270 = sand.u32 %s31, 1
        %s271 = smul.addr %s270, 1792
        %s272 = scalar_lea.vmem [#allocation3], %s271
        %p273 = pneg %p44
        %p274 = pneg %p41
        %p275 = pneg %p65
        %p276 = pneg %p62
        %p277 = pneg %p86
        %p278 = pneg %p83
        %p279 = pneg %p107
        %p280 = pneg %p104
        %p281 = pneg %p128
        %p282 = pneg %p125
        %p283 = pneg %p154
        %p284 = pneg %p151
        %p285 = scmp.lt.s32.totalorder %s23, 1
        %s286 = scalar_select %p285, %s23, 1
        %s287 = smul.addr %s286, 2
        %s288 = scalar_lea.vmem %s5, %s287
        %s289 = smul.u32 32, %s23
        %s290 = ssub.s32 38, %s289
        %p291 = scmp.lt.s32.totalorder %s290, 32
        %s292 = scalar_select %p291, %s290, 32
        %s293 = smul.u32 128, %s292
        %s294 = smul.u32 %s293, 7
        %p295 = scmp.lt.s32.totalorder %s23, 1
        %s296 = scalar_select %p295, %s23, 1
        %s297 = smul.addr %s296, 2
        %s298 = scalar_lea.vmem %s5, %s297
        %v300 = vld [vmem:[%s251] sm:$0xff]
        %v301 = vld [vmem:[%s251 + $0x8] sm:$0xff]
        %v302 = vld [vmem:[%s251 + $0x10] sm:$0xff]
        %v303 = vld [vmem:[%s251 + $0x18] sm:$0xff]
        %v304 = vld [vmem:[%s251 + $0x20] sm:$0xff]
        %v305 = vld [vmem:[%s251 + $0x28] sm:$0xff]
        %v306 = vld [vmem:[%s251 + $0x30] sm:$0xff]
        %v307 = vld [vmem:[%s251 + $0x38] sm:$0xff]
        %v308 = vld [vmem:[%s251 + $0x40] sm:$0xff]
        %v309 = vld [vmem:[%s251 + $0x48] sm:$0xff]
        %v310 = vld [vmem:[%s251 + $0x50] sm:$0xff]
        %v311 = vld [vmem:[%s251 + $0x58] sm:$0xff]
        %v312 = vld [vmem:[%s251 + $0x60] sm:$0xff]
        %v313 = vld [vmem:[%s251 + $0x68] sm:$0xff]
        %v314 = vld [vmem:[%s251 + $0x70] sm:$0xff]
        %v315 = vld [vmem:[%s251 + $0x78] sm:$0xff]
        %v316 = vld [vmem:[%s251 + $0x80] sm:$0xff]
        %v317 = vld [vmem:[%s251 + $0x88] sm:$0xff]
        %v318 = vld [vmem:[%s251 + $0x90] sm:$0xff]
        %v319 = vld [vmem:[%s251 + $0x98] sm:$0xff]
        %v320 = vld [vmem:[%s251 + $0xa0] sm:$0xff]
        %v321 = vld [vmem:[%s251 + $0xa8] sm:$0xff]
        %v322 = vld [vmem:[%s251 + $0xb0] sm:$0xff]
        %v323 = vld [vmem:[%s251 + $0xb8] sm:$0xff]
        %v324 = vld [vmem:[%s251 + $0xc0] sm:$0xff]
        %v325 = vld [vmem:[%s251 + $0xc8] sm:$0xff]
        %v326 = vld [vmem:[%s251 + $0xd0] sm:$0xff]
        %v327 = vld [vmem:[%s251 + $0xd8] sm:$0xff]
        %v328 = vld [vmem:[%s251 + $0xe0] sm:$0xff]
        %v329 = vld [vmem:[%s251 + $0xe8] sm:$0xff]
        %v330 = vld [vmem:[%s251 + $0xf0] sm:$0xff]
        %v331 = vld [vmem:[%s251 + $0xf8] sm:$0xff]
        %v332 = vld [vmem:[%s251 + $0x100] sm:$0xff]
        %v333 = vld [vmem:[%s251 + $0x108] sm:$0xff]
        %v334 = vld [vmem:[%s251 + $0x110] sm:$0xff]
        %v335 = vld [vmem:[%s251 + $0x118] sm:$0xff]
        %v336 = vld [vmem:[%s251 + $0x120] sm:$0xff]
        %v337 = vld [vmem:[%s251 + $0x128] sm:$0xff]
        %v338 = vld [vmem:[%s251 + $0x130] sm:$0xff]
        %v339 = vld [vmem:[%s251 + $0x138] sm:$0xff]
        %v340 = vld [vmem:[%s251 + $0x140] sm:$0xff]
        %v341 = vld [vmem:[%s251 + $0x148] sm:$0xff]
        %v342 = vld [vmem:[%s251 + $0x150] sm:$0xff]
        %v343 = vld [vmem:[%s251 + $0x158] sm:$0xff]
        %v344 = vld [vmem:[%s251 + $0x160] sm:$0xff]
        %v345 = vld [vmem:[%s251 + $0x168] sm:$0xff]
        %v346 = vld [vmem:[%s251 + $0x170] sm:$0xff]
        %v347 = vld [vmem:[%s251 + $0x178] sm:$0xff]
        %v348 = vld [vmem:[%s251 + $0x180] sm:$0xff]
        %v349 = vld [vmem:[%s251 + $0x188] sm:$0xff]
        %v350 = vld [vmem:[%s251 + $0x190] sm:$0xff]
        %v351 = vld [vmem:[%s251 + $0x198] sm:$0xff]
        %v352 = vld [vmem:[%s251 + $0x1a0] sm:$0xff]
        %v353 = vld [vmem:[%s251 + $0x1a8] sm:$0xff]
        %v354 = vld [vmem:[%s251 + $0x1b0] sm:$0xff]
        %v355 = vld [vmem:[%s251 + $0x1b8] sm:$0xff]
        %v356 = vld [vmem:[%s251 + $0x1c0] sm:$0xff]
        %v357 = vld [vmem:[%s251 + $0x1c8] sm:$0xff]
        %v358 = vld [vmem:[%s251 + $0x1d0] sm:$0xff]
        %v359 = vld [vmem:[%s251 + $0x1d8] sm:$0xff]
        %v360 = vld [vmem:[%s251 + $0x1e0] sm:$0xff]
        %v361 = vld [vmem:[%s251 + $0x1e8] sm:$0xff]
        %v362 = vld [vmem:[%s251 + $0x1f0] sm:$0xff]
        %v363 = vld [vmem:[%s251 + $0x1f8] sm:$0xff]
        %v364 = vld [vmem:[%s251 + $0x200] sm:$0xff]
        %v365 = vld [vmem:[%s251 + $0x208] sm:$0xff]
        %v366 = vld [vmem:[%s251 + $0x210] sm:$0xff]
        %v367 = vld [vmem:[%s251 + $0x218] sm:$0xff]
        %v368 = vld [vmem:[%s251 + $0x220] sm:$0xff]
        %v369 = vld [vmem:[%s251 + $0x228] sm:$0xff]
        %v370 = vld [vmem:[%s251 + $0x230] sm:$0xff]
        %v371 = vld [vmem:[%s251 + $0x238] sm:$0xff]
        %v372 = vld [vmem:[%s251 + $0x240] sm:$0xff]
        %v373 = vld [vmem:[%s251 + $0x248] sm:$0xff]
        %v374 = vld [vmem:[%s251 + $0x250] sm:$0xff]
        %v375 = vld [vmem:[%s251 + $0x258] sm:$0xff]
        %v376 = vld [vmem:[%s251 + $0x260] sm:$0xff]
        %v377 = vld [vmem:[%s251 + $0x268] sm:$0xff]
        %v378 = vld [vmem:[%s251 + $0x270] sm:$0xff]
        %v379 = vld [vmem:[%s251 + $0x278] sm:$0xff]
        %v380 = vld [vmem:[%s251 + $0x280] sm:$0xff]
        %v381 = vld [vmem:[%s251 + $0x288] sm:$0xff]
        %v382 = vld [vmem:[%s251 + $0x290] sm:$0xff]
        %v383 = vld [vmem:[%s251 + $0x298] sm:$0xff]
        %v384 = vld [vmem:[%s251 + $0x2a0] sm:$0xff]
        %v385 = vld [vmem:[%s251 + $0x2a8] sm:$0xff]
        %v386 = vld [vmem:[%s251 + $0x2b0] sm:$0xff]
        %v387 = vld [vmem:[%s251 + $0x2b8] sm:$0xff]
        %v388 = vld [vmem:[%s251 + $0x2c0] sm:$0xff]
        %v389 = vld [vmem:[%s251 + $0x2c8] sm:$0xff]
        %v390 = vld [vmem:[%s251 + $0x2d0] sm:$0xff]
        %v391 = vld [vmem:[%s251 + $0x2d8] sm:$0xff]
        %v392 = vld [vmem:[%s251 + $0x2e0] sm:$0xff]
        %v393 = vld [vmem:[%s251 + $0x2e8] sm:$0xff]
        %v394 = vld [vmem:[%s251 + $0x2f0] sm:$0xff]
        %v395 = vld [vmem:[%s251 + $0x2f8] sm:$0xff]
        %v396 = vld [vmem:[%s251 + $0x300] sm:$0xff]
        %v397 = vld [vmem:[%s251 + $0x308] sm:$0xff]
        %v398 = vld [vmem:[%s251 + $0x310] sm:$0xff]
        %v399 = vld [vmem:[%s251 + $0x318] sm:$0xff]
        %v400 = vld [vmem:[%s251 + $0x320] sm:$0xff]
        %v401 = vld [vmem:[%s251 + $0x328] sm:$0xff]
        %v402 = vld [vmem:[%s251 + $0x330] sm:$0xff]
        %v403 = vld [vmem:[%s251 + $0x338] sm:$0xff]
        %v404 = vld [vmem:[%s251 + $0x340] sm:$0xff]
        %v405 = vld [vmem:[%s251 + $0x348] sm:$0xff]
        %v406 = vld [vmem:[%s251 + $0x350] sm:$0xff]
        %v407 = vld [vmem:[%s251 + $0x358] sm:$0xff]
        %v408 = vld [vmem:[%s251 + $0x360] sm:$0xff]
        %v409 = vld [vmem:[%s251 + $0x368] sm:$0xff]
        %v410 = vld [vmem:[%s251 + $0x370] sm:$0xff]
        %v411 = vld [vmem:[%s251 + $0x378] sm:$0xff]
        %v412 = vld [vmem:[%s251 + $0x380] sm:$0xff]
        %v413 = vld [vmem:[%s251 + $0x388] sm:$0xff]
        %v414 = vld [vmem:[%s251 + $0x390] sm:$0xff]
        %v415 = vld [vmem:[%s251 + $0x398] sm:$0xff]
        %v416 = vld [vmem:[%s251 + $0x3a0] sm:$0xff]
        %v417 = vld [vmem:[%s251 + $0x3a8] sm:$0xff]
        %v418 = vld [vmem:[%s251 + $0x3b0] sm:$0xff]
        %v419 = vld [vmem:[%s251 + $0x3b8] sm:$0xff]
        %v420 = vld [vmem:[%s251 + $0x3c0] sm:$0xff]
        %v421 = vld [vmem:[%s251 + $0x3c8] sm:$0xff]
        %v422 = vld [vmem:[%s251 + $0x3d0] sm:$0xff]
        %v423 = vld [vmem:[%s251 + $0x3d8] sm:$0xff]
        %v424 = vld [vmem:[%s251 + $0x3e0] sm:$0xff]
        %v425 = vld [vmem:[%s251 + $0x3e8] sm:$0xff]
        %v426 = vld [vmem:[%s251 + $0x3f0] sm:$0xff]
        %v427 = vld [vmem:[%s251 + $0x3f8] sm:$0xff]
        %v428 = vld [vmem:[%s251 + $0x400] sm:$0xff]
        %v429 = vld [vmem:[%s251 + $0x408] sm:$0xff]
        %v430 = vld [vmem:[%s251 + $0x410] sm:$0xff]
        %v431 = vld [vmem:[%s251 + $0x418] sm:$0xff]
        %v432 = vld [vmem:[%s251 + $0x420] sm:$0xff]
        %v433 = vld [vmem:[%s251 + $0x428] sm:$0xff]
        %v434 = vld [vmem:[%s251 + $0x430] sm:$0xff]
        %v435 = vld [vmem:[%s251 + $0x438] sm:$0xff]
        %v436 = vld [vmem:[%s251 + $0x440] sm:$0xff]
        %v437 = vld [vmem:[%s251 + $0x448] sm:$0xff]
        %v438 = vld [vmem:[%s251 + $0x450] sm:$0xff]
        %v439 = vld [vmem:[%s251 + $0x458] sm:$0xff]
        %v440 = vld [vmem:[%s251 + $0x460] sm:$0xff]
        %v441 = vld [vmem:[%s251 + $0x468] sm:$0xff]
        %v442 = vld [vmem:[%s251 + $0x470] sm:$0xff]
        %v443 = vld [vmem:[%s251 + $0x478] sm:$0xff]
        %v444 = vld [vmem:[%s251 + $0x480] sm:$0xff]
        %v445 = vld [vmem:[%s251 + $0x488] sm:$0xff]
        %v446 = vld [vmem:[%s251 + $0x490] sm:$0xff]
        %v447 = vld [vmem:[%s251 + $0x498] sm:$0xff]
        %v448 = vld [vmem:[%s251 + $0x4a0] sm:$0xff]
        %v449 = vld [vmem:[%s251 + $0x4a8] sm:$0xff]
        %v450 = vld [vmem:[%s251 + $0x4b0] sm:$0xff]
        %v451 = vld [vmem:[%s251 + $0x4b8] sm:$0xff]
        %v452 = vld [vmem:[%s251 + $0x4c0] sm:$0xff]
        %v453 = vld [vmem:[%s251 + $0x4c8] sm:$0xff]
        %v454 = vld [vmem:[%s251 + $0x4d0] sm:$0xff]
        %v455 = vld [vmem:[%s251 + $0x4d8] sm:$0xff]
        %v456 = vld [vmem:[%s251 + $0x4e0] sm:$0xff]
        %v457 = vld [vmem:[%s251 + $0x4e8] sm:$0xff]
        %v458 = vld [vmem:[%s251 + $0x4f0] sm:$0xff]
        %v459 = vld [vmem:[%s251 + $0x4f8] sm:$0xff]
        %v460 = vld [vmem:[%s251 + $0x500] sm:$0xff]
        %v461 = vld [vmem:[%s251 + $0x508] sm:$0xff]
        %v462 = vld [vmem:[%s251 + $0x510] sm:$0xff]
        %v463 = vld [vmem:[%s251 + $0x518] sm:$0xff]
        %v464 = vld [vmem:[%s251 + $0x520] sm:$0xff]
        %v465 = vld [vmem:[%s251 + $0x528] sm:$0xff]
        %v466 = vld [vmem:[%s251 + $0x530] sm:$0xff]
        %v467 = vld [vmem:[%s251 + $0x538] sm:$0xff]
        %v468 = vld [vmem:[%s251 + $0x540] sm:$0xff]
        %v469 = vld [vmem:[%s251 + $0x548] sm:$0xff]
        %v470 = vld [vmem:[%s251 + $0x550] sm:$0xff]
        %v471 = vld [vmem:[%s251 + $0x558] sm:$0xff]
        %v472 = vld [vmem:[%s251 + $0x560] sm:$0xff]
        %v473 = vld [vmem:[%s251 + $0x568] sm:$0xff]
        %v474 = vld [vmem:[%s251 + $0x570] sm:$0xff]
        %v475 = vld [vmem:[%s251 + $0x578] sm:$0xff]
        %v476 = vld [vmem:[%s251 + $0x580] sm:$0xff]
        %v477 = vld [vmem:[%s251 + $0x588] sm:$0xff]
        %v478 = vld [vmem:[%s251 + $0x590] sm:$0xff]
        %v479 = vld [vmem:[%s251 + $0x598] sm:$0xff]
        %v480 = vld [vmem:[%s251 + $0x5a0] sm:$0xff]
        %v481 = vld [vmem:[%s251 + $0x5a8] sm:$0xff]
        %v482 = vld [vmem:[%s251 + $0x5b0] sm:$0xff]
        %v483 = vld [vmem:[%s251 + $0x5b8] sm:$0xff]
        %v484 = vld [vmem:[%s251 + $0x5c0] sm:$0xff]
        %v485 = vld [vmem:[%s251 + $0x5c8] sm:$0xff]
        %v486 = vld [vmem:[%s251 + $0x5d0] sm:$0xff]
        %v487 = vld [vmem:[%s251 + $0x5d8] sm:$0xff]
        %v488 = vld [vmem:[%s251 + $0x5e0] sm:$0xff]
        %v489 = vld [vmem:[%s251 + $0x5e8] sm:$0xff]
        %v490 = vld [vmem:[%s251 + $0x5f0] sm:$0xff]
        %v491 = vld [vmem:[%s251 + $0x5f8] sm:$0xff]
        %v492 = vld [vmem:[%s251 + $0x600] sm:$0xff]
        %v493 = vld [vmem:[%s251 + $0x608] sm:$0xff]
        %v494 = vld [vmem:[%s251 + $0x610] sm:$0xff]
        %v495 = vld [vmem:[%s251 + $0x618] sm:$0xff]
        %v496 = vld [vmem:[%s251 + $0x620] sm:$0xff]
        %v497 = vld [vmem:[%s251 + $0x628] sm:$0xff]
        %v498 = vld [vmem:[%s251 + $0x630] sm:$0xff]
        %v499 = vld [vmem:[%s251 + $0x638] sm:$0xff]
        %v500 = vld [vmem:[%s251 + $0x640] sm:$0xff]
        %v501 = vld [vmem:[%s251 + $0x648] sm:$0xff]
        %v502 = vld [vmem:[%s251 + $0x650] sm:$0xff]
        %v503 = vld [vmem:[%s251 + $0x658] sm:$0xff]
        %v504 = vld [vmem:[%s251 + $0x660] sm:$0xff]
        %v505 = vld [vmem:[%s251 + $0x668] sm:$0xff]
        %v506 = vld [vmem:[%s251 + $0x670] sm:$0xff]
        %v507 = vld [vmem:[%s251 + $0x678] sm:$0xff]
        %v508 = vld [vmem:[%s251 + $0x680] sm:$0xff]
        %v509 = vld [vmem:[%s251 + $0x688] sm:$0xff]
        %v510 = vld [vmem:[%s251 + $0x690] sm:$0xff]
        %v511 = vld [vmem:[%s251 + $0x698] sm:$0xff]
        %v512 = vld [vmem:[%s251 + $0x6a0] sm:$0xff]
        %v513 = vld [vmem:[%s251 + $0x6a8] sm:$0xff]
        %v514 = vld [vmem:[%s251 + $0x6b0] sm:$0xff]
        %v515 = vld [vmem:[%s251 + $0x6b8] sm:$0xff]
        %v516 = vld [vmem:[%s251 + $0x6c0] sm:$0xff]
        %v517 = vld [vmem:[%s251 + $0x6c8] sm:$0xff]
        %v518 = vld [vmem:[%s251 + $0x6d0] sm:$0xff]
        %v519 = vld [vmem:[%s251 + $0x6d8] sm:$0xff]
        %v520 = vld [vmem:[%s251 + $0x6e0] sm:$0xff]
        %v521 = vld [vmem:[%s251 + $0x6e8] sm:$0xff]
        %v522 = vld [vmem:[%s251 + $0x6f0] sm:$0xff]
        %v523 = vld [vmem:[%s251 + $0x6f8] sm:$0xff]
        %v524 = vpack.c.bf16 %v307, %v300
        %v525 = vpack.c.bf16 %v308, %v301
        %v526 = vpack.c.bf16 %v309, %v302
        %v527 = vpack.c.bf16 %v310, %v303
        %v528 = vpack.c.bf16 %v311, %v304
        %v529 = vpack.c.bf16 %v312, %v305
        %v530 = vpack.c.bf16 %v313, %v306
        %v531 = vpack.c.bf16 %v321, %v314
        %v532 = vpack.c.bf16 %v322, %v315
        %v533 = vpack.c.bf16 %v323, %v316
        %v534 = vpack.c.bf16 %v324, %v317
        %v535 = vpack.c.bf16 %v325, %v318
        %v536 = vpack.c.bf16 %v326, %v319
        %v537 = vpack.c.bf16 %v327, %v320
        %v538 = vpack.c.bf16 %v335, %v328
        %v539 = vpack.c.bf16 %v336, %v329
        %v540 = vpack.c.bf16 %v337, %v330
        %v541 = vpack.c.bf16 %v338, %v331
        %v542 = vpack.c.bf16 %v339, %v332
        %v543 = vpack.c.bf16 %v340, %v333
        %v544 = vpack.c.bf16 %v341, %v334
        %v545 = vpack.c.bf16 %v349, %v342
        %v546 = vpack.c.bf16 %v350, %v343
        %v547 = vpack.c.bf16 %v351, %v344
        %v548 = vpack.c.bf16 %v352, %v345
        %v549 = vpack.c.bf16 %v353, %v346
        %v550 = vpack.c.bf16 %v354, %v347
        %v551 = vpack.c.bf16 %v355, %v348
        %v552 = vpack.c.bf16 %v363, %v356
        %v553 = vpack.c.bf16 %v364, %v357
        %v554 = vpack.c.bf16 %v365, %v358
        %v555 = vpack.c.bf16 %v366, %v359
        %v556 = vpack.c.bf16 %v367, %v360
        %v557 = vpack.c.bf16 %v368, %v361
        %v558 = vpack.c.bf16 %v369, %v362
        %v559 = vpack.c.bf16 %v377, %v370
        %v560 = vpack.c.bf16 %v378, %v371
        %v561 = vpack.c.bf16 %v379, %v372
        %v562 = vpack.c.bf16 %v380, %v373
        %v563 = vpack.c.bf16 %v381, %v374
        %v564 = vpack.c.bf16 %v382, %v375
        %v565 = vpack.c.bf16 %v383, %v376
        %v566 = vpack.c.bf16 %v391, %v384
        %v567 = vpack.c.bf16 %v392, %v385
        %v568 = vpack.c.bf16 %v393, %v386
        %v569 = vpack.c.bf16 %v394, %v387
        %v570 = vpack.c.bf16 %v395, %v388
        %v571 = vpack.c.bf16 %v396, %v389
        %v572 = vpack.c.bf16 %v397, %v390
        %v573 = vpack.c.bf16 %v405, %v398
        %v574 = vpack.c.bf16 %v406, %v399
        %v575 = vpack.c.bf16 %v407, %v400
        %v576 = vpack.c.bf16 %v408, %v401
        %v577 = vpack.c.bf16 %v409, %v402
        %v578 = vpack.c.bf16 %v410, %v403
        %v579 = vpack.c.bf16 %v411, %v404
        %v580 = vpack.c.bf16 %v419, %v412
        %v581 = vpack.c.bf16 %v420, %v413
        %v582 = vpack.c.bf16 %v421, %v414
        %v583 = vpack.c.bf16 %v422, %v415
        %v584 = vpack.c.bf16 %v423, %v416
        %v585 = vpack.c.bf16 %v424, %v417
        %v586 = vpack.c.bf16 %v425, %v418
        %v587 = vpack.c.bf16 %v433, %v426
        %v588 = vpack.c.bf16 %v434, %v427
        %v589 = vpack.c.bf16 %v435, %v428
        %v590 = vpack.c.bf16 %v436, %v429
        %v591 = vpack.c.bf16 %v437, %v430
        %v592 = vpack.c.bf16 %v438, %v431
        %v593 = vpack.c.bf16 %v439, %v432
        %v594 = vpack.c.bf16 %v447, %v440
        %v595 = vpack.c.bf16 %v448, %v441
        %v596 = vpack.c.bf16 %v449, %v442
        %v597 = vpack.c.bf16 %v450, %v443
        %v598 = vpack.c.bf16 %v451, %v444
        %v599 = vpack.c.bf16 %v452, %v445
        %v600 = vpack.c.bf16 %v453, %v446
        %v601 = vpack.c.bf16 %v461, %v454
        %v602 = vpack.c.bf16 %v462, %v455
        %v603 = vpack.c.bf16 %v463, %v456
        %v604 = vpack.c.bf16 %v464, %v457
        %v605 = vpack.c.bf16 %v465, %v458
        %v606 = vpack.c.bf16 %v466, %v459
        %v607 = vpack.c.bf16 %v467, %v460
        %v608 = vpack.c.bf16 %v475, %v468
        %v609 = vpack.c.bf16 %v476, %v469
        %v610 = vpack.c.bf16 %v477, %v470
        %v611 = vpack.c.bf16 %v478, %v471
        %v612 = vpack.c.bf16 %v479, %v472
        %v613 = vpack.c.bf16 %v480, %v473
        %v614 = vpack.c.bf16 %v481, %v474
        %v615 = vpack.c.bf16 %v489, %v482
        %v616 = vpack.c.bf16 %v490, %v483
        %v617 = vpack.c.bf16 %v491, %v484
        %v618 = vpack.c.bf16 %v492, %v485
        %v619 = vpack.c.bf16 %v493, %v486
        %v620 = vpack.c.bf16 %v494, %v487
        %v621 = vpack.c.bf16 %v495, %v488
        %v622 = vpack.c.bf16 %v503, %v496
        %v623 = vpack.c.bf16 %v504, %v497
        %v624 = vpack.c.bf16 %v505, %v498
        %v625 = vpack.c.bf16 %v506, %v499
        %v626 = vpack.c.bf16 %v507, %v500
        %v627 = vpack.c.bf16 %v508, %v501
        %v628 = vpack.c.bf16 %v509, %v502
        %v629 = vpack.c.bf16 %v517, %v510
        %v630 = vpack.c.bf16 %v518, %v511
        %v631 = vpack.c.bf16 %v519, %v512
        %v632 = vpack.c.bf16 %v520, %v513
        %v633 = vpack.c.bf16 %v521, %v514
        %v634 = vpack.c.bf16 %v522, %v515
        %v635 = vpack.c.bf16 %v523, %v516
        %v636 = vld [vmem:[#allocation5] sm:$0xff]
        %v637 = vld [vmem:[#allocation5 + $0x8] sm:$0xff]
        %v638 = vld [vmem:[#allocation5 + $0x10] sm:$0xff]
        %v639 = vld [vmem:[#allocation5 + $0x18] sm:$0xff]
        %v640 = vld [vmem:[#allocation5 + $0x20] sm:$0xff]
        %v641 = vld [vmem:[#allocation5 + $0x28] sm:$0xff]
        %v642 = vld [vmem:[#allocation5 + $0x30] sm:$0xff]
        %v643 = vld [vmem:[#allocation5 + $0x38] sm:$0xff]
        %v644 = vld [vmem:[#allocation5 + $0x40] sm:$0xff]
        %v645 = vld [vmem:[#allocation5 + $0x48] sm:$0xff]
        %v646 = vld [vmem:[#allocation5 + $0x50] sm:$0xff]
        %v647 = vld [vmem:[#allocation5 + $0x58] sm:$0xff]
        %v648 = vld [vmem:[#allocation5 + $0x60] sm:$0xff]
        %v649 = vld [vmem:[#allocation5 + $0x68] sm:$0xff]
        %v650 = vld [vmem:[#allocation5 + $0x70] sm:$0xff]
        %v651 = vld [vmem:[#allocation5 + $0x78] sm:$0xff]
        %v652 = vld [vmem:[#allocation5 + $0x80] sm:$0xff]
        %v653 = vld [vmem:[#allocation5 + $0x88] sm:$0xff]
        %v654 = vld [vmem:[#allocation5 + $0x90] sm:$0xff]
        %v655 = vld [vmem:[#allocation5 + $0x98] sm:$0xff]
        %v656 = vld [vmem:[#allocation5 + $0xa0] sm:$0xff]
        %v657 = vld [vmem:[#allocation5 + $0xa8] sm:$0xff]
        %v658 = vld [vmem:[#allocation5 + $0xb0] sm:$0xff]
        %v659 = vld [vmem:[#allocation5 + $0xb8] sm:$0xff]
        %v660 = vld [vmem:[#allocation5 + $0xc0] sm:$0xff]
        %v661 = vld [vmem:[#allocation5 + $0xc8] sm:$0xff]
        %v662 = vld [vmem:[#allocation5 + $0xd0] sm:$0xff]
        %v663 = vld [vmem:[#allocation5 + $0xd8] sm:$0xff]
        %v664 = vld [vmem:[#allocation5 + $0xe0] sm:$0xff]
        %v665 = vld [vmem:[#allocation5 + $0xe8] sm:$0xff]
        %v666 = vld [vmem:[#allocation5 + $0xf0] sm:$0xff]
        %v667 = vld [vmem:[#allocation5 + $0xf8] sm:$0xff]
        %v668 = vld [vmem:[#allocation5 + $0x100] sm:$0xff]
        %v669 = vld [vmem:[#allocation5 + $0x108] sm:$0xff]
        %v670 = vld [vmem:[#allocation5 + $0x110] sm:$0xff]
        %v671 = vld [vmem:[#allocation5 + $0x118] sm:$0xff]
        %v672 = vld [vmem:[#allocation5 + $0x120] sm:$0xff]
        %v673 = vld [vmem:[#allocation5 + $0x128] sm:$0xff]
        %v674 = vld [vmem:[#allocation5 + $0x130] sm:$0xff]
        %v675 = vld [vmem:[#allocation5 + $0x138] sm:$0xff]
        %v676 = vld [vmem:[#allocation5 + $0x140] sm:$0xff]
        %v677 = vld [vmem:[#allocation5 + $0x148] sm:$0xff]
        %v678 = vld [vmem:[#allocation5 + $0x150] sm:$0xff]
        %v679 = vld [vmem:[#allocation5 + $0x158] sm:$0xff]
        %v680 = vld [vmem:[#allocation5 + $0x160] sm:$0xff]
        %v681 = vld [vmem:[#allocation5 + $0x168] sm:$0xff]
        %v682 = vld [vmem:[#allocation5 + $0x170] sm:$0xff]
        %v683 = vld [vmem:[#allocation5 + $0x178] sm:$0xff]
        %v684 = vld [vmem:[#allocation5 + $0x180] sm:$0xff]
        %v685 = vld [vmem:[#allocation5 + $0x188] sm:$0xff]
        %v686 = vld [vmem:[#allocation5 + $0x190] sm:$0xff]
        %v687 = vld [vmem:[#allocation5 + $0x198] sm:$0xff]
        %v688 = vld [vmem:[#allocation5 + $0x1a0] sm:$0xff]
        %v689 = vld [vmem:[#allocation5 + $0x1a8] sm:$0xff]
        %v690 = vld [vmem:[#allocation5 + $0x1b0] sm:$0xff]
        %v691 = vld [vmem:[#allocation5 + $0x1b8] sm:$0xff]
        %v692 = vld [vmem:[#allocation5 + $0x1c0] sm:$0xff]
        %v693 = vld [vmem:[#allocation5 + $0x1c8] sm:$0xff]
        %v694 = vld [vmem:[#allocation5 + $0x1d0] sm:$0xff]
        %v695 = vld [vmem:[#allocation5 + $0x1d8] sm:$0xff]
        %v696 = vld [vmem:[#allocation5 + $0x1e0] sm:$0xff]
        %v697 = vld [vmem:[#allocation5 + $0x1e8] sm:$0xff]
        %v698 = vld [vmem:[#allocation5 + $0x1f0] sm:$0xff]
        %v699 = vld [vmem:[#allocation5 + $0x1f8] sm:$0xff]
        %v700 = vld [vmem:[#allocation5 + $0x200] sm:$0xff]
        %v701 = vld [vmem:[#allocation5 + $0x208] sm:$0xff]
        %v702 = vld [vmem:[#allocation5 + $0x210] sm:$0xff]
        %v703 = vld [vmem:[#allocation5 + $0x218] sm:$0xff]
        %v704 = vld [vmem:[#allocation5 + $0x220] sm:$0xff]
        %v705 = vld [vmem:[#allocation5 + $0x228] sm:$0xff]
        %v706 = vld [vmem:[#allocation5 + $0x230] sm:$0xff]
        %v707 = vld [vmem:[#allocation5 + $0x238] sm:$0xff]
        %v708 = vld [vmem:[#allocation5 + $0x240] sm:$0xff]
        %v709 = vld [vmem:[#allocation5 + $0x248] sm:$0xff]
        %v710 = vld [vmem:[#allocation5 + $0x250] sm:$0xff]
        %v711 = vld [vmem:[#allocation5 + $0x258] sm:$0xff]
        %v712 = vld [vmem:[#allocation5 + $0x260] sm:$0xff]
        %v713 = vld [vmem:[#allocation5 + $0x268] sm:$0xff]
        %v714 = vld [vmem:[#allocation5 + $0x270] sm:$0xff]
        %v715 = vld [vmem:[#allocation5 + $0x278] sm:$0xff]
        %v716 = vld [vmem:[#allocation5 + $0x280] sm:$0xff]
        %v717 = vld [vmem:[#allocation5 + $0x288] sm:$0xff]
        %v718 = vld [vmem:[#allocation5 + $0x290] sm:$0xff]
        %v719 = vld [vmem:[#allocation5 + $0x298] sm:$0xff]
        %v720 = vld [vmem:[#allocation5 + $0x2a0] sm:$0xff]
        %v721 = vld [vmem:[#allocation5 + $0x2a8] sm:$0xff]
        %v722 = vld [vmem:[#allocation5 + $0x2b0] sm:$0xff]
        %v723 = vld [vmem:[#allocation5 + $0x2b8] sm:$0xff]
        %v724 = vld [vmem:[#allocation5 + $0x2c0] sm:$0xff]
        %v725 = vld [vmem:[#allocation5 + $0x2c8] sm:$0xff]
        %v726 = vld [vmem:[#allocation5 + $0x2d0] sm:$0xff]
        %v727 = vld [vmem:[#allocation5 + $0x2d8] sm:$0xff]
        %v728 = vld [vmem:[#allocation5 + $0x2e0] sm:$0xff]
        %v729 = vld [vmem:[#allocation5 + $0x2e8] sm:$0xff]
        %v730 = vld [vmem:[#allocation5 + $0x2f0] sm:$0xff]
        %v731 = vld [vmem:[#allocation5 + $0x2f8] sm:$0xff]
        %v732 = vld [vmem:[#allocation5 + $0x300] sm:$0xff]
        %v733 = vld [vmem:[#allocation5 + $0x308] sm:$0xff]
        %v734 = vld [vmem:[#allocation7] sm:$0x3]
        %v736 = vlaneseq
        %v737 = vshrl.u32 %v736, 7
        %v738 = vsub.s32 0, %v737
        %v739 = vrot.slane %v734, %v738
        %v740 = vlaneseq
        %v741 = vshrl.u32 %v740, 7
        %v742 = vsub.s32 1, %v741
        %v743 = vrot.slane %v734, %v742
        %v844 = vunpack.c.l.b16 %v636
        %v845 = vunpack.c.h.b16 %v636
        %v846 = vunpack.c.l.b16 %v637
        %v847 = vunpack.c.h.b16 %v637
        %v848 = vunpack.c.l.b16 %v638
        %v849 = vunpack.c.h.b16 %v638
        %v850 = vunpack.c.l.b16 %v639
        %v851 = vunpack.c.h.b16 %v639
        %v852 = vunpack.c.l.b16 %v640
        %v853 = vunpack.c.h.b16 %v640
        %v854 = vunpack.c.l.b16 %v641
        %v855 = vunpack.c.h.b16 %v641
        %v856 = vunpack.c.l.b16 %v642
        %v857 = vunpack.c.h.b16 %v642
        %v858 = vunpack.c.l.b16 %v643
        %v859 = vunpack.c.h.b16 %v643
        %v860 = vunpack.c.l.b16 %v644
        %v861 = vunpack.c.h.b16 %v644
        %v862 = vunpack.c.l.b16 %v645
        %v863 = vunpack.c.h.b16 %v645
        %v864 = vunpack.c.l.b16 %v646
        %v865 = vunpack.c.h.b16 %v646
        %v866 = vunpack.c.l.b16 %v647
        %v867 = vunpack.c.h.b16 %v647
        %v868 = vunpack.c.l.b16 %v648
        %v869 = vunpack.c.h.b16 %v648
        %v870 = vunpack.c.l.b16 %v649
        %v871 = vunpack.c.h.b16 %v649
        %v872 = vunpack.c.l.b16 %v650
        %v873 = vunpack.c.h.b16 %v650
        %v874 = vunpack.c.l.b16 %v651
        %v875 = vunpack.c.h.b16 %v651
        %v876 = vunpack.c.l.b16 %v652
        %v877 = vunpack.c.h.b16 %v652
        %v878 = vunpack.c.l.b16 %v653
        %v879 = vunpack.c.h.b16 %v653
        %v880 = vunpack.c.l.b16 %v654
        %v881 = vunpack.c.h.b16 %v654
        %v882 = vunpack.c.l.b16 %v655
        %v883 = vunpack.c.h.b16 %v655
        %v884 = vunpack.c.l.b16 %v656
        %v885 = vunpack.c.h.b16 %v656
        %v886 = vunpack.c.l.b16 %v657
        %v887 = vunpack.c.h.b16 %v657
        %v888 = vunpack.c.l.b16 %v658
        %v889 = vunpack.c.h.b16 %v658
        %v890 = vunpack.c.l.b16 %v659
        %v891 = vunpack.c.h.b16 %v659
        %v892 = vunpack.c.l.b16 %v660
        %v893 = vunpack.c.h.b16 %v660
        %v894 = vunpack.c.l.b16 %v661
        %v895 = vunpack.c.h.b16 %v661
        %v896 = vunpack.c.l.b16 %v662
        %v897 = vunpack.c.h.b16 %v662
        %v898 = vunpack.c.l.b16 %v663
        %v899 = vunpack.c.h.b16 %v663
        %v900 = vunpack.c.l.b16 %v664
        %v901 = vunpack.c.h.b16 %v664
        %v902 = vunpack.c.l.b16 %v665
        %v903 = vunpack.c.h.b16 %v665
        %v904 = vunpack.c.l.b16 %v666
        %v905 = vunpack.c.h.b16 %v666
        %v906 = vunpack.c.l.b16 %v667
        %v907 = vunpack.c.h.b16 %v667
        %v908 = vunpack.c.l.b16 %v668
        %v909 = vunpack.c.h.b16 %v668
        %v910 = vunpack.c.l.b16 %v669
        %v911 = vunpack.c.h.b16 %v669
        %v912 = vunpack.c.l.b16 %v670
        %v913 = vunpack.c.h.b16 %v670
        %v914 = vunpack.c.l.b16 %v671
        %v915 = vunpack.c.h.b16 %v671
        %v916 = vunpack.c.l.b16 %v672
        %v917 = vunpack.c.h.b16 %v672
        %v918 = vunpack.c.l.b16 %v673
        %v919 = vunpack.c.h.b16 %v673
        %v920 = vunpack.c.l.b16 %v674
        %v921 = vunpack.c.h.b16 %v674
        %v922 = vunpack.c.l.b16 %v675
        %v923 = vunpack.c.h.b16 %v675
        %v924 = vunpack.c.l.b16 %v676
        %v925 = vunpack.c.h.b16 %v676
        %v926 = vunpack.c.l.b16 %v677
        %v927 = vunpack.c.h.b16 %v677
        %v928 = vunpack.c.l.b16 %v678
        %v929 = vunpack.c.h.b16 %v678
        %v930 = vunpack.c.l.b16 %v679
        %v931 = vunpack.c.h.b16 %v679
        %v932 = vunpack.c.l.b16 %v680
        %v933 = vunpack.c.h.b16 %v680
        %v934 = vunpack.c.l.b16 %v681
        %v935 = vunpack.c.h.b16 %v681
        %v936 = vunpack.c.l.b16 %v682
        %v937 = vunpack.c.h.b16 %v682
        %v938 = vunpack.c.l.b16 %v683
        %v939 = vunpack.c.h.b16 %v683
        %v940 = vunpack.c.l.b16 %v684
        %v941 = vunpack.c.h.b16 %v684
        %v942 = vunpack.c.l.b16 %v685
        %v943 = vunpack.c.h.b16 %v685
        %v944 = vunpack.c.l.b16 %v686
        %v945 = vunpack.c.h.b16 %v686
        %v946 = vunpack.c.l.b16 %v687
        %v947 = vunpack.c.h.b16 %v687
        %v948 = vunpack.c.l.b16 %v688
        %v949 = vunpack.c.h.b16 %v688
        %v950 = vunpack.c.l.b16 %v689
        %v951 = vunpack.c.h.b16 %v689
        %v952 = vunpack.c.l.b16 %v690
        %v953 = vunpack.c.h.b16 %v690
        %v954 = vunpack.c.l.b16 %v691
        %v955 = vunpack.c.h.b16 %v691
        %v956 = vunpack.c.l.b16 %v692
        %v957 = vunpack.c.h.b16 %v692
        %v958 = vunpack.c.l.b16 %v693
        %v959 = vunpack.c.h.b16 %v693
        %v960 = vunpack.c.l.b16 %v694
        %v961 = vunpack.c.h.b16 %v694
        %v962 = vunpack.c.l.b16 %v695
        %v963 = vunpack.c.h.b16 %v695
        %v964 = vunpack.c.l.b16 %v696
        %v965 = vunpack.c.h.b16 %v696
        %v966 = vunpack.c.l.b16 %v697
        %v967 = vunpack.c.h.b16 %v697
        %v968 = vunpack.c.l.b16 %v698
        %v969 = vunpack.c.h.b16 %v698
        %v970 = vunpack.c.l.b16 %v699
        %v971 = vunpack.c.h.b16 %v699
        %v972 = vunpack.c.l.b16 %v700
        %v973 = vunpack.c.h.b16 %v700
        %v974 = vunpack.c.l.b16 %v701
        %v975 = vunpack.c.h.b16 %v701
        %v976 = vunpack.c.l.b16 %v702
        %v977 = vunpack.c.h.b16 %v702
        %v978 = vunpack.c.l.b16 %v703
        %v979 = vunpack.c.h.b16 %v703
        %v980 = vunpack.c.l.b16 %v704
        %v981 = vunpack.c.h.b16 %v704
        %v982 = vunpack.c.l.b16 %v705
        %v983 = vunpack.c.h.b16 %v705
        %v984 = vunpack.c.l.b16 %v706
        %v985 = vunpack.c.h.b16 %v706
        %v986 = vunpack.c.l.b16 %v707
        %v987 = vunpack.c.h.b16 %v707
        %v988 = vunpack.c.l.b16 %v708
        %v989 = vunpack.c.h.b16 %v708
        %v990 = vunpack.c.l.b16 %v709
        %v991 = vunpack.c.h.b16 %v709
        %v992 = vunpack.c.l.b16 %v710
        %v993 = vunpack.c.h.b16 %v710
        %v994 = vunpack.c.l.b16 %v711
        %v995 = vunpack.c.h.b16 %v711
        %v996 = vunpack.c.l.b16 %v712
        %v997 = vunpack.c.h.b16 %v712
        %v998 = vunpack.c.l.b16 %v713
        %v999 = vunpack.c.h.b16 %v713
        %v1000 = vunpack.c.l.b16 %v714
        %v1001 = vunpack.c.h.b16 %v714
        %v1002 = vunpack.c.l.b16 %v715
        %v1003 = vunpack.c.h.b16 %v715
        %v1004 = vunpack.c.l.b16 %v716
        %v1005 = vunpack.c.h.b16 %v716
        %v1006 = vunpack.c.l.b16 %v717
        %v1007 = vunpack.c.h.b16 %v717
        %v1008 = vunpack.c.l.b16 %v718
        %v1009 = vunpack.c.h.b16 %v718
        %v1010 = vunpack.c.l.b16 %v719
        %v1011 = vunpack.c.h.b16 %v719
        %v1012 = vunpack.c.l.b16 %v720
        %v1013 = vunpack.c.h.b16 %v720
        %v1014 = vunpack.c.l.b16 %v721
        %v1015 = vunpack.c.h.b16 %v721
        %v1016 = vunpack.c.l.b16 %v722
        %v1017 = vunpack.c.h.b16 %v722
        %v1018 = vunpack.c.l.b16 %v723
        %v1019 = vunpack.c.h.b16 %v723
        %v1020 = vunpack.c.l.b16 %v724
        %v1021 = vunpack.c.h.b16 %v724
        %v1022 = vunpack.c.l.b16 %v725
        %v1023 = vunpack.c.h.b16 %v725
        %v1024 = vunpack.c.l.b16 %v726
        %v1025 = vunpack.c.h.b16 %v726
        %v1026 = vunpack.c.l.b16 %v727
        %v1027 = vunpack.c.h.b16 %v727
        %v1028 = vunpack.c.l.b16 %v728
        %v1029 = vunpack.c.h.b16 %v728
        %v1030 = vunpack.c.l.b16 %v729
        %v1031 = vunpack.c.h.b16 %v729
        %v1032 = vunpack.c.l.b16 %v730
        %v1033 = vunpack.c.h.b16 %v730
        %v1034 = vunpack.c.l.b16 %v731
        %v1035 = vunpack.c.h.b16 %v731
        %v1036 = vunpack.c.l.b16 %v732
        %v1037 = vunpack.c.h.b16 %v732
        %v1038 = vunpack.c.l.b16 %v733
        %v1039 = vunpack.c.h.b16 %v733
        %v1040 = vpack.c.b16 %v846, %v844
        %v1041 = vpack.c.b16 %v847, %v845
        %v1042 = vpack.c.b16 %v850, %v848
        %v1043 = vpack.c.b16 %v851, %v849
        %v1044 = vpack.c.b16 %v854, %v852
        %v1045 = vpack.c.b16 %v855, %v853
        %v1046 = vpack.c.b16 %v858, %v856
        %v1047 = vpack.c.b16 %v859, %v857
        %v1048 = vpack.c.b16 %v862, %v860
        %v1049 = vpack.c.b16 %v863, %v861
        %v1050 = vpack.c.b16 %v866, %v864
        %v1051 = vpack.c.b16 %v867, %v865
        %v1052 = vpack.c.b16 %v870, %v868
        %v1053 = vpack.c.b16 %v871, %v869
        %v1054 = vpack.c.b16 %v874, %v872
        %v1055 = vpack.c.b16 %v875, %v873
        %v1056 = vpack.c.b16 %v878, %v876
        %v1057 = vpack.c.b16 %v879, %v877
        %v1058 = vpack.c.b16 %v882, %v880
        %v1059 = vpack.c.b16 %v883, %v881
        %v1060 = vpack.c.b16 %v886, %v884
        %v1061 = vpack.c.b16 %v887, %v885
        %v1062 = vpack.c.b16 %v890, %v888
        %v1063 = vpack.c.b16 %v891, %v889
        %v1064 = vpack.c.b16 %v894, %v892
        %v1065 = vpack.c.b16 %v895, %v893
        %v1066 = vpack.c.b16 %v898, %v896
        %v1067 = vpack.c.b16 %v899, %v897
        %v1068 = vpack.c.b16 %v902, %v900
        %v1069 = vpack.c.b16 %v903, %v901
        %v1070 = vpack.c.b16 %v906, %v904
        %v1071 = vpack.c.b16 %v907, %v905
        %v1072 = vpack.c.b16 %v910, %v908
        %v1073 = vpack.c.b16 %v911, %v909
        %v1074 = vpack.c.b16 %v914, %v912
        %v1075 = vpack.c.b16 %v915, %v913
        %v1076 = vpack.c.b16 %v918, %v916
        %v1077 = vpack.c.b16 %v919, %v917
        %v1078 = vpack.c.b16 %v922, %v920
        %v1079 = vpack.c.b16 %v923, %v921
        %v1080 = vpack.c.b16 %v926, %v924
        %v1081 = vpack.c.b16 %v927, %v925
        %v1082 = vpack.c.b16 %v930, %v928
        %v1083 = vpack.c.b16 %v931, %v929
        %v1084 = vpack.c.b16 %v934, %v932
        %v1085 = vpack.c.b16 %v935, %v933
        %v1086 = vpack.c.b16 %v938, %v936
        %v1087 = vpack.c.b16 %v939, %v937
        %v1088 = vpack.c.b16 %v942, %v940
        %v1089 = vpack.c.b16 %v943, %v941
        %v1090 = vpack.c.b16 %v946, %v944
        %v1091 = vpack.c.b16 %v947, %v945
        %v1092 = vpack.c.b16 %v950, %v948
        %v1093 = vpack.c.b16 %v951, %v949
        %v1094 = vpack.c.b16 %v954, %v952
        %v1095 = vpack.c.b16 %v955, %v953
        %v1096 = vpack.c.b16 %v958, %v956
        %v1097 = vpack.c.b16 %v959, %v957
        %v1098 = vpack.c.b16 %v962, %v960
        %v1099 = vpack.c.b16 %v963, %v961
        %v1100 = vpack.c.b16 %v966, %v964
        %v1101 = vpack.c.b16 %v967, %v965
        %v1102 = vpack.c.b16 %v970, %v968
        %v1103 = vpack.c.b16 %v971, %v969
        %v1104 = vpack.c.b16 %v974, %v972
        %v1105 = vpack.c.b16 %v975, %v973
        %v1106 = vpack.c.b16 %v978, %v976
        %v1107 = vpack.c.b16 %v979, %v977
        %v1108 = vpack.c.b16 %v982, %v980
        %v1109 = vpack.c.b16 %v983, %v981
        %v1110 = vpack.c.b16 %v986, %v984
        %v1111 = vpack.c.b16 %v987, %v985
        %v1112 = vpack.c.b16 %v990, %v988
        %v1113 = vpack.c.b16 %v991, %v989
        %v1114 = vpack.c.b16 %v994, %v992
        %v1115 = vpack.c.b16 %v995, %v993
        %v1116 = vpack.c.b16 %v998, %v996
        %v1117 = vpack.c.b16 %v999, %v997
        %v1118 = vpack.c.b16 %v1002, %v1000
        %v1119 = vpack.c.b16 %v1003, %v1001
        %v1120 = vpack.c.b16 %v1006, %v1004
        %v1121 = vpack.c.b16 %v1007, %v1005
        %v1122 = vpack.c.b16 %v1010, %v1008
        %v1123 = vpack.c.b16 %v1011, %v1009
        %v1124 = vpack.c.b16 %v1014, %v1012
        %v1125 = vpack.c.b16 %v1015, %v1013
        %v1126 = vpack.c.b16 %v1018, %v1016
        %v1127 = vpack.c.b16 %v1019, %v1017
        %v1128 = vpack.c.b16 %v1022, %v1020
        %v1129 = vpack.c.b16 %v1023, %v1021
        %v1130 = vpack.c.b16 %v1026, %v1024
        %v1131 = vpack.c.b16 %v1027, %v1025
        %v1132 = vpack.c.b16 %v1030, %v1028
        %v1133 = vpack.c.b16 %v1031, %v1029
        %v1134 = vpack.c.b16 %v1034, %v1032
        %v1135 = vpack.c.b16 %v1035, %v1033
        %v1136 = vpack.c.b16 %v1038, %v1036
        %v1137 = vpack.c.b16 %v1039, %v1037
        %vm1236 = vcmask 130048
        %v1238 = vsel %vm1236, %v530, 0
        %v1241 = vsel %vm1236, %v537, 0
        %v1244 = vsel %vm1236, %v544, 0
        %v1247 = vsel %vm1236, %v551, 0
        %v1250 = vsel %vm1236, %v558, 0
        %v1253 = vsel %vm1236, %v565, 0
        %v1256 = vsel %vm1236, %v572, 0
        %v1259 = vsel %vm1236, %v579, 0
        %v1262 = vsel %vm1236, %v586, 0
        %v1265 = vsel %vm1236, %v593, 0
        %v1268 = vsel %vm1236, %v600, 0
        %v1271 = vsel %vm1236, %v607, 0
        %v1274 = vsel %vm1236, %v614, 0
        %v1277 = vsel %vm1236, %v621, 0
        %v1280 = vsel %vm1236, %v628, 0
        %v1283 = vsel %vm1236, %v635, 0
        %1285 = vmatprep.subr.bf16.mxu0 %v1055
        %1286 = vmatpush1.bf16.msra.mxu0 %v1054
        %1287 = vmatprep.subr.bf16.mxu0 %v1053
        %1288 = vmatpush1.bf16.msra.mxu0 %v1052
        %1289 = vmatprep.subr.bf16.mxu0 %v1051
        %1290 = vmatpush1.bf16.msra.mxu0 %v1050
        %1291 = vmatprep.subr.bf16.mxu0 %v1049
        %1292 = vmatpush1.bf16.msra.mxu0 %v1048
        %1293 = vmatprep.subr.bf16.mxu0 %v1047
        %1294 = vmatpush1.bf16.msra.mxu0 %v1046
        %1295 = vmatprep.subr.bf16.mxu0 %v1045
        %1296 = vmatpush1.bf16.msra.mxu0 %v1044
        %1297 = vmatprep.subr.bf16.mxu0 %v1043
        %1298 = vmatpush1.bf16.msra.mxu0 %v1042
        %1299 = vmatprep.subr.bf16.mxu0 %v1041
        %1300 = vmatpush1.bf16.msra.mxu0 %v1040
        %1301 = vmatprep.subr.bf16.mxu0 %v1071
        %1302 = vmatpush2.bf16.msra.mxu0 %v1070
        %1303 = vmatprep.subr.bf16.mxu0 %v1069
        %1304 = vmatpush2.bf16.msra.mxu0 %v1068
        %1305 = vmatprep.subr.bf16.mxu0 %v1067
        %1306 = vmatpush2.bf16.msra.mxu0 %v1066
        %1307 = vmatprep.subr.bf16.mxu0 %v1065
        %1308 = vmatpush2.bf16.msra.mxu0 %v1064
        %1309 = vmatprep.subr.bf16.mxu0 %v1063
        %1310 = vmatpush2.bf16.msra.mxu0 %v1062
        %1311 = vmatprep.subr.bf16.mxu0 %v1061
        %1312 = vmatpush2.bf16.msra.mxu0 %v1060
        %1313 = vmatprep.subr.bf16.mxu0 %v1059
        %1314 = vmatpush2.bf16.msra.mxu0 %v1058
        %1315 = vmatprep.subr.bf16.mxu0 %v1057
        %1316 = vmatpush2.bf16.msra.mxu0 %v1056
        %1317 = vmatprep.mubr.bf16.mxu0 %v525
        %1318 = vmatmul.mubr.bf16.gmra.mxu0 %v524
        %v1319 = vpop.f32.mrf.mxu0
        %v1320 = vadd.f32 %v739, %v1319
        %v1321 = vpop.f32.mrf.mxu0
        %v1322 = vadd.f32 %v743, %v1321
        %v1323 = vpop.f32.mrf.mxu0
        %v1324 = vadd.f32 %v739, %v1323
        %v1325 = vpop.f32.mrf.mxu0
        %v1326 = vadd.f32 %v743, %v1325
        %1327 = vmatprep.mubr.bf16.mxu0 %v532
        %1328 = vmatmul.mubr.bf16.gmra.mxu0 %v531
        %v1329 = vpop.f32.mrf.mxu0
        %v1330 = vadd.f32 %v739, %v1329
        %v1331 = vpop.f32.mrf.mxu0
        %v1332 = vadd.f32 %v743, %v1331
        %v1333 = vpop.f32.mrf.mxu0
        %v1334 = vadd.f32 %v739, %v1333
        %v1335 = vpop.f32.mrf.mxu0
        %v1336 = vadd.f32 %v743, %v1335
        %1337 = vmatprep.mubr.bf16.mxu0 %v539
        %1338 = vmatmul.mubr.bf16.gmra.mxu0 %v538
        %v1339 = vpop.f32.mrf.mxu0
        %v1340 = vadd.f32 %v739, %v1339
        %v1341 = vpop.f32.mrf.mxu0
        %v1342 = vadd.f32 %v743, %v1341
        %v1343 = vpop.f32.mrf.mxu0
        %v1344 = vadd.f32 %v739, %v1343
        %v1345 = vpop.f32.mrf.mxu0
        %v1346 = vadd.f32 %v743, %v1345
        %1347 = vmatprep.mubr.bf16.mxu0 %v546
        %1348 = vmatmul.mubr.bf16.gmra.mxu0 %v545
        %v1349 = vpop.f32.mrf.mxu0
        %v1350 = vadd.f32 %v739, %v1349
        %v1351 = vpop.f32.mrf.mxu0
        %v1352 = vadd.f32 %v743, %v1351
        %v1353 = vpop.f32.mrf.mxu0
        %v1354 = vadd.f32 %v739, %v1353
        %v1355 = vpop.f32.mrf.mxu0
        %v1356 = vadd.f32 %v743, %v1355
        %1357 = vmatprep.mubr.bf16.mxu0 %v553
        %1358 = vmatmul.mubr.bf16.gmra.mxu0 %v552
        %v1359 = vpop.f32.mrf.mxu0
        %v1360 = vadd.f32 %v739, %v1359
        %v1361 = vpop.f32.mrf.mxu0
        %v1362 = vadd.f32 %v743, %v1361
        %v1363 = vpop.f32.mrf.mxu0
        %v1364 = vadd.f32 %v739, %v1363
        %v1365 = vpop.f32.mrf.mxu0
        %v1366 = vadd.f32 %v743, %v1365
        %1367 = vmatprep.mubr.bf16.mxu0 %v560
        %1368 = vmatmul.mubr.bf16.gmra.mxu0 %v559
        %v1369 = vpop.f32.mrf.mxu0
        %v1370 = vadd.f32 %v739, %v1369
        %v1371 = vpop.f32.mrf.mxu0
        %v1372 = vadd.f32 %v743, %v1371
        %v1373 = vpop.f32.mrf.mxu0
        %v1374 = vadd.f32 %v739, %v1373
        %v1375 = vpop.f32.mrf.mxu0
        %v1376 = vadd.f32 %v743, %v1375
        %1377 = vmatprep.mubr.bf16.mxu0 %v567
        %1378 = vmatmul.mubr.bf16.gmra.mxu0 %v566
        %v1379 = vpop.f32.mrf.mxu0
        %v1380 = vadd.f32 %v739, %v1379
        %v1381 = vpop.f32.mrf.mxu0
        %v1382 = vadd.f32 %v743, %v1381
        %v1383 = vpop.f32.mrf.mxu0
        %v1384 = vadd.f32 %v739, %v1383
        %v1385 = vpop.f32.mrf.mxu0
        %v1386 = vadd.f32 %v743, %v1385
        %1387 = vmatprep.mubr.bf16.mxu0 %v574
        %1388 = vmatmul.mubr.bf16.gmra.mxu0 %v573
        %v1389 = vpop.f32.mrf.mxu0
        %v1390 = vadd.f32 %v739, %v1389
        %v1391 = vpop.f32.mrf.mxu0
        %v1392 = vadd.f32 %v743, %v1391
        %v1393 = vpop.f32.mrf.mxu0
        %v1394 = vadd.f32 %v739, %v1393
        %v1395 = vpop.f32.mrf.mxu0
        %v1396 = vadd.f32 %v743, %v1395
        %1397 = vmatprep.mubr.bf16.mxu0 %v581
        %1398 = vmatmul.mubr.bf16.gmra.mxu0 %v580
        %v1399 = vpop.f32.mrf.mxu0
        %v1400 = vadd.f32 %v739, %v1399
        %v1401 = vpop.f32.mrf.mxu0
        %v1402 = vadd.f32 %v743, %v1401
        %v1403 = vpop.f32.mrf.mxu0
        %v1404 = vadd.f32 %v739, %v1403
        %v1405 = vpop.f32.mrf.mxu0
        %v1406 = vadd.f32 %v743, %v1405
        %1407 = vmatprep.mubr.bf16.mxu0 %v588
        %1408 = vmatmul.mubr.bf16.gmra.mxu0 %v587
        %v1409 = vpop.f32.mrf.mxu0
        %v1410 = vadd.f32 %v739, %v1409
        %v1411 = vpop.f32.mrf.mxu0
        %v1412 = vadd.f32 %v743, %v1411
        %v1413 = vpop.f32.mrf.mxu0
        %v1414 = vadd.f32 %v739, %v1413
        %v1415 = vpop.f32.mrf.mxu0
        %v1416 = vadd.f32 %v743, %v1415
        %1417 = vmatprep.mubr.bf16.mxu0 %v595
        %1418 = vmatmul.mubr.bf16.gmra.mxu0 %v594
        %v1419 = vpop.f32.mrf.mxu0
        %v1420 = vadd.f32 %v739, %v1419
        %v1421 = vpop.f32.mrf.mxu0
        %v1422 = vadd.f32 %v743, %v1421
        %v1423 = vpop.f32.mrf.mxu0
        %v1424 = vadd.f32 %v739, %v1423
        %v1425 = vpop.f32.mrf.mxu0
        %v1426 = vadd.f32 %v743, %v1425
        %1427 = vmatprep.mubr.bf16.mxu0 %v602
        %1428 = vmatmul.mubr.bf16.gmra.mxu0 %v601
        %v1429 = vpop.f32.mrf.mxu0
        %v1430 = vadd.f32 %v739, %v1429
        %v1431 = vpop.f32.mrf.mxu0
        %v1432 = vadd.f32 %v743, %v1431
        %v1433 = vpop.f32.mrf.mxu0
        %v1434 = vadd.f32 %v739, %v1433
        %v1435 = vpop.f32.mrf.mxu0
        %v1436 = vadd.f32 %v743, %v1435
        %1437 = vmatprep.mubr.bf16.mxu0 %v609
        %1438 = vmatmul.mubr.bf16.gmra.mxu0 %v608
        %v1439 = vpop.f32.mrf.mxu0
        %v1440 = vadd.f32 %v739, %v1439
        %v1441 = vpop.f32.mrf.mxu0
        %v1442 = vadd.f32 %v743, %v1441
        %v1443 = vpop.f32.mrf.mxu0
        %v1444 = vadd.f32 %v739, %v1443
        %v1445 = vpop.f32.mrf.mxu0
        %v1446 = vadd.f32 %v743, %v1445
        %1447 = vmatprep.mubr.bf16.mxu0 %v616
        %1448 = vmatmul.mubr.bf16.gmra.mxu0 %v615
        %v1449 = vpop.f32.mrf.mxu0
        %v1450 = vadd.f32 %v739, %v1449
        %v1451 = vpop.f32.mrf.mxu0
        %v1452 = vadd.f32 %v743, %v1451
        %v1453 = vpop.f32.mrf.mxu0
        %v1454 = vadd.f32 %v739, %v1453
        %v1455 = vpop.f32.mrf.mxu0
        %v1456 = vadd.f32 %v743, %v1455
        %1457 = vmatprep.mubr.bf16.mxu0 %v623
        %1458 = vmatmul.mubr.bf16.gmra.mxu0 %v622
        %v1459 = vpop.f32.mrf.mxu0
        %v1460 = vadd.f32 %v739, %v1459
        %v1461 = vpop.f32.mrf.mxu0
        %v1462 = vadd.f32 %v743, %v1461
        %v1463 = vpop.f32.mrf.mxu0
        %v1464 = vadd.f32 %v739, %v1463
        %v1465 = vpop.f32.mrf.mxu0
        %v1466 = vadd.f32 %v743, %v1465
        %1467 = vmatprep.mubr.bf16.mxu0 %v630
        %1468 = vmatmul.mubr.bf16.gmra.mxu0 %v629
        %v1469 = vpop.f32.mrf.mxu0
        %v1470 = vadd.f32 %v739, %v1469
        %v1471 = vpop.f32.mrf.mxu0
        %v1472 = vadd.f32 %v743, %v1471
        %v1473 = vpop.f32.mrf.mxu0
        %v1474 = vadd.f32 %v739, %v1473
        %v1475 = vpop.f32.mrf.mxu0
        %v1476 = vadd.f32 %v743, %v1475
        %1477 = vdwg.mxu0
        %1478 = vmatprep.subr.bf16.mxu0 %v1087
        %1479 = vmatpush1.bf16.msra.mxu0 %v1086
        %1480 = vmatprep.subr.bf16.mxu0 %v1085
        %1481 = vmatpush1.bf16.msra.mxu0 %v1084
        %1482 = vmatprep.subr.bf16.mxu0 %v1083
        %1483 = vmatpush1.bf16.msra.mxu0 %v1082
        %1484 = vmatprep.subr.bf16.mxu0 %v1081
        %1485 = vmatpush1.bf16.msra.mxu0 %v1080
        %1486 = vmatprep.subr.bf16.mxu0 %v1079
        %1487 = vmatpush1.bf16.msra.mxu0 %v1078
        %1488 = vmatprep.subr.bf16.mxu0 %v1077
        %1489 = vmatpush1.bf16.msra.mxu0 %v1076
        %1490 = vmatprep.subr.bf16.mxu0 %v1075
        %1491 = vmatpush1.bf16.msra.mxu0 %v1074
        %1492 = vmatprep.subr.bf16.mxu0 %v1073
        %1493 = vmatpush1.bf16.msra.mxu0 %v1072
        %1494 = vmatprep.subr.bf16.mxu0 %v1103
        %1495 = vmatpush2.bf16.msra.mxu0 %v1102
        %1496 = vmatprep.subr.bf16.mxu0 %v1101
        %1497 = vmatpush2.bf16.msra.mxu0 %v1100
        %1498 = vmatprep.subr.bf16.mxu0 %v1099
        %1499 = vmatpush2.bf16.msra.mxu0 %v1098
        %1500 = vmatprep.subr.bf16.mxu0 %v1097
        %1501 = vmatpush2.bf16.msra.mxu0 %v1096
        %1502 = vmatprep.subr.bf16.mxu0 %v1095
        %1503 = vmatpush2.bf16.msra.mxu0 %v1094
        %1504 = vmatprep.subr.bf16.mxu0 %v1093
        %1505 = vmatpush2.bf16.msra.mxu0 %v1092
        %1506 = vmatprep.subr.bf16.mxu0 %v1091
        %1507 = vmatpush2.bf16.msra.mxu0 %v1090
        %1508 = vmatprep.subr.bf16.mxu0 %v1089
        %1509 = vmatpush2.bf16.msra.mxu0 %v1088
        %1510 = vmatprep.mubr.bf16.mxu0 %v527
        %1511 = vmatmul.mubr.bf16.gmra.mxu0 %v526
        %v1512 = vpop.f32.mrf.mxu0
        %v1513 = vadd.f32 %v1320, %v1512
        %v1514 = vpop.f32.mrf.mxu0
        %v1515 = vadd.f32 %v1322, %v1514
        %v1516 = vpop.f32.mrf.mxu0
        %v1517 = vadd.f32 %v1324, %v1516
        %v1518 = vpop.f32.mrf.mxu0
        %v1519 = vadd.f32 %v1326, %v1518
        %1520 = vmatprep.mubr.bf16.mxu0 %v534
        %1521 = vmatmul.mubr.bf16.gmra.mxu0 %v533
        %v1522 = vpop.f32.mrf.mxu0
        %v1523 = vadd.f32 %v1330, %v1522
        %v1524 = vpop.f32.mrf.mxu0
        %v1525 = vadd.f32 %v1332, %v1524
        %v1526 = vpop.f32.mrf.mxu0
        %v1527 = vadd.f32 %v1334, %v1526
        %v1528 = vpop.f32.mrf.mxu0
        %v1529 = vadd.f32 %v1336, %v1528
        %1530 = vmatprep.mubr.bf16.mxu0 %v541
        %1531 = vmatmul.mubr.bf16.gmra.mxu0 %v540
        %v1532 = vpop.f32.mrf.mxu0
        %v1533 = vadd.f32 %v1340, %v1532
        %v1534 = vpop.f32.mrf.mxu0
        %v1535 = vadd.f32 %v1342, %v1534
        %v1536 = vpop.f32.mrf.mxu0
        %v1537 = vadd.f32 %v1344, %v1536
        %v1538 = vpop.f32.mrf.mxu0
        %v1539 = vadd.f32 %v1346, %v1538
        %1540 = vmatprep.mubr.bf16.mxu0 %v548
        %1541 = vmatmul.mubr.bf16.gmra.mxu0 %v547
        %v1542 = vpop.f32.mrf.mxu0
        %v1543 = vadd.f32 %v1350, %v1542
        %v1544 = vpop.f32.mrf.mxu0
        %v1545 = vadd.f32 %v1352, %v1544
        %v1546 = vpop.f32.mrf.mxu0
        %v1547 = vadd.f32 %v1354, %v1546
        %v1548 = vpop.f32.mrf.mxu0
        %v1549 = vadd.f32 %v1356, %v1548
        %1550 = vmatprep.mubr.bf16.mxu0 %v555
        %1551 = vmatmul.mubr.bf16.gmra.mxu0 %v554
        %v1552 = vpop.f32.mrf.mxu0
        %v1553 = vadd.f32 %v1360, %v1552
        %v1554 = vpop.f32.mrf.mxu0
        %v1555 = vadd.f32 %v1362, %v1554
        %v1556 = vpop.f32.mrf.mxu0
        %v1557 = vadd.f32 %v1364, %v1556
        %v1558 = vpop.f32.mrf.mxu0
        %v1559 = vadd.f32 %v1366, %v1558
        %1560 = vmatprep.mubr.bf16.mxu0 %v562
        %1561 = vmatmul.mubr.bf16.gmra.mxu0 %v561
        %v1562 = vpop.f32.mrf.mxu0
        %v1563 = vadd.f32 %v1370, %v1562
        %v1564 = vpop.f32.mrf.mxu0
        %v1565 = vadd.f32 %v1372, %v1564
        %v1566 = vpop.f32.mrf.mxu0
        %v1567 = vadd.f32 %v1374, %v1566
        %v1568 = vpop.f32.mrf.mxu0
        %v1569 = vadd.f32 %v1376, %v1568
        %1570 = vmatprep.mubr.bf16.mxu0 %v569
        %1571 = vmatmul.mubr.bf16.gmra.mxu0 %v568
        %v1572 = vpop.f32.mrf.mxu0
        %v1573 = vadd.f32 %v1380, %v1572
        %v1574 = vpop.f32.mrf.mxu0
        %v1575 = vadd.f32 %v1382, %v1574
        %v1576 = vpop.f32.mrf.mxu0
        %v1577 = vadd.f32 %v1384, %v1576
        %v1578 = vpop.f32.mrf.mxu0
        %v1579 = vadd.f32 %v1386, %v1578
        %1580 = vmatprep.mubr.bf16.mxu0 %v576
        %1581 = vmatmul.mubr.bf16.gmra.mxu0 %v575
        %v1582 = vpop.f32.mrf.mxu0
        %v1583 = vadd.f32 %v1390, %v1582
        %v1584 = vpop.f32.mrf.mxu0
        %v1585 = vadd.f32 %v1392, %v1584
        %v1586 = vpop.f32.mrf.mxu0
        %v1587 = vadd.f32 %v1394, %v1586
        %v1588 = vpop.f32.mrf.mxu0
        %v1589 = vadd.f32 %v1396, %v1588
        %1590 = vmatprep.mubr.bf16.mxu0 %v583
        %1591 = vmatmul.mubr.bf16.gmra.mxu0 %v582
        %v1592 = vpop.f32.mrf.mxu0
        %v1593 = vadd.f32 %v1400, %v1592
        %v1594 = vpop.f32.mrf.mxu0
        %v1595 = vadd.f32 %v1402, %v1594
        %v1596 = vpop.f32.mrf.mxu0
        %v1597 = vadd.f32 %v1404, %v1596
        %v1598 = vpop.f32.mrf.mxu0
        %v1599 = vadd.f32 %v1406, %v1598
        %1600 = vmatprep.mubr.bf16.mxu0 %v590
        %1601 = vmatmul.mubr.bf16.gmra.mxu0 %v589
        %v1602 = vpop.f32.mrf.mxu0
        %v1603 = vadd.f32 %v1410, %v1602
        %v1604 = vpop.f32.mrf.mxu0
        %v1605 = vadd.f32 %v1412, %v1604
        %v1606 = vpop.f32.mrf.mxu0
        %v1607 = vadd.f32 %v1414, %v1606
        %v1608 = vpop.f32.mrf.mxu0
        %v1609 = vadd.f32 %v1416, %v1608
        %1610 = vmatprep.mubr.bf16.mxu0 %v597
        %1611 = vmatmul.mubr.bf16.gmra.mxu0 %v596
        %v1612 = vpop.f32.mrf.mxu0
        %v1613 = vadd.f32 %v1420, %v1612
        %v1614 = vpop.f32.mrf.mxu0
        %v1615 = vadd.f32 %v1422, %v1614
        %v1616 = vpop.f32.mrf.mxu0
        %v1617 = vadd.f32 %v1424, %v1616
        %v1618 = vpop.f32.mrf.mxu0
        %v1619 = vadd.f32 %v1426, %v1618
        %1620 = vmatprep.mubr.bf16.mxu0 %v604
        %1621 = vmatmul.mubr.bf16.gmra.mxu0 %v603
        %v1622 = vpop.f32.mrf.mxu0
        %v1623 = vadd.f32 %v1430, %v1622
        %v1624 = vpop.f32.mrf.mxu0
        %v1625 = vadd.f32 %v1432, %v1624
        %v1626 = vpop.f32.mrf.mxu0
        %v1627 = vadd.f32 %v1434, %v1626
        %v1628 = vpop.f32.mrf.mxu0
        %v1629 = vadd.f32 %v1436, %v1628
        %1630 = vmatprep.mubr.bf16.mxu0 %v611
        %1631 = vmatmul.mubr.bf16.gmra.mxu0 %v610
        %v1632 = vpop.f32.mrf.mxu0
        %v1633 = vadd.f32 %v1440, %v1632
        %v1634 = vpop.f32.mrf.mxu0
        %v1635 = vadd.f32 %v1442, %v1634
        %v1636 = vpop.f32.mrf.mxu0
        %v1637 = vadd.f32 %v1444, %v1636
        %v1638 = vpop.f32.mrf.mxu0
        %v1639 = vadd.f32 %v1446, %v1638
        %1640 = vmatprep.mubr.bf16.mxu0 %v618
        %1641 = vmatmul.mubr.bf16.gmra.mxu0 %v617
        %v1642 = vpop.f32.mrf.mxu0
        %v1643 = vadd.f32 %v1450, %v1642
        %v1644 = vpop.f32.mrf.mxu0
        %v1645 = vadd.f32 %v1452, %v1644
        %v1646 = vpop.f32.mrf.mxu0
        %v1647 = vadd.f32 %v1454, %v1646
        %v1648 = vpop.f32.mrf.mxu0
        %v1649 = vadd.f32 %v1456, %v1648
        %1650 = vmatprep.mubr.bf16.mxu0 %v625
        %1651 = vmatmul.mubr.bf16.gmra.mxu0 %v624
        %v1652 = vpop.f32.mrf.mxu0
        %v1653 = vadd.f32 %v1460, %v1652
        %v1654 = vpop.f32.mrf.mxu0
        %v1655 = vadd.f32 %v1462, %v1654
        %v1656 = vpop.f32.mrf.mxu0
        %v1657 = vadd.f32 %v1464, %v1656
        %v1658 = vpop.f32.mrf.mxu0
        %v1659 = vadd.f32 %v1466, %v1658
        %1660 = vmatprep.mubr.bf16.mxu0 %v632
        %1661 = vmatmul.mubr.bf16.gmra.mxu0 %v631
        %v1662 = vpop.f32.mrf.mxu0
        %v1663 = vadd.f32 %v1470, %v1662
        %v1664 = vpop.f32.mrf.mxu0
        %v1665 = vadd.f32 %v1472, %v1664
        %v1666 = vpop.f32.mrf.mxu0
        %v1667 = vadd.f32 %v1474, %v1666
        %v1668 = vpop.f32.mrf.mxu0
        %v1669 = vadd.f32 %v1476, %v1668
        %1670 = vdwg.mxu0
        %1671 = vmatprep.subr.bf16.mxu0 %v1119
        %1672 = vmatpush1.bf16.msra.mxu0 %v1118
        %1673 = vmatprep.subr.bf16.mxu0 %v1117
        %1674 = vmatpush1.bf16.msra.mxu0 %v1116
        %1675 = vmatprep.subr.bf16.mxu0 %v1115
        %1676 = vmatpush1.bf16.msra.mxu0 %v1114
        %1677 = vmatprep.subr.bf16.mxu0 %v1113
        %1678 = vmatpush1.bf16.msra.mxu0 %v1112
        %1679 = vmatprep.subr.bf16.mxu0 %v1111
        %1680 = vmatpush1.bf16.msra.mxu0 %v1110
        %1681 = vmatprep.subr.bf16.mxu0 %v1109
        %1682 = vmatpush1.bf16.msra.mxu0 %v1108
        %1683 = vmatprep.subr.bf16.mxu0 %v1107
        %1684 = vmatpush1.bf16.msra.mxu0 %v1106
        %1685 = vmatprep.subr.bf16.mxu0 %v1105
        %1686 = vmatpush1.bf16.msra.mxu0 %v1104
        %1687 = vmatprep.subr.bf16.mxu0 %v1135
        %1688 = vmatpush2.bf16.msra.mxu0 %v1134
        %1689 = vmatprep.subr.bf16.mxu0 %v1133
        %1690 = vmatpush2.bf16.msra.mxu0 %v1132
        %1691 = vmatprep.subr.bf16.mxu0 %v1131
        %1692 = vmatpush2.bf16.msra.mxu0 %v1130
        %1693 = vmatprep.subr.bf16.mxu0 %v1129
        %1694 = vmatpush2.bf16.msra.mxu0 %v1128
        %1695 = vmatprep.subr.bf16.mxu0 %v1127
        %1696 = vmatpush2.bf16.msra.mxu0 %v1126
        %1697 = vmatprep.subr.bf16.mxu0 %v1125
        %1698 = vmatpush2.bf16.msra.mxu0 %v1124
        %1699 = vmatprep.subr.bf16.mxu0 %v1123
        %1700 = vmatpush2.bf16.msra.mxu0 %v1122
        %1701 = vmatprep.subr.bf16.mxu0 %v1121
        %1702 = vmatpush2.bf16.msra.mxu0 %v1120
        %1703 = vmatprep.mubr.bf16.mxu0 %v529
        %1704 = vmatmul.mubr.bf16.gmra.mxu0 %v528
        %v1705 = vpop.f32.mrf.mxu0
        %v1706 = vadd.f32 %v1513, %v1705
        %v1707 = vpop.f32.mrf.mxu0
        %v1708 = vadd.f32 %v1515, %v1707
        %v1709 = vpop.f32.mrf.mxu0
        %v1710 = vadd.f32 %v1517, %v1709
        %v1711 = vpop.f32.mrf.mxu0
        %v1712 = vadd.f32 %v1519, %v1711
        %1713 = vmatprep.mubr.bf16.mxu0 %v536
        %1714 = vmatmul.mubr.bf16.gmra.mxu0 %v535
        %v1715 = vpop.f32.mrf.mxu0
        %v1716 = vadd.f32 %v1523, %v1715
        %v1717 = vpop.f32.mrf.mxu0
        %v1718 = vadd.f32 %v1525, %v1717
        %v1719 = vpop.f32.mrf.mxu0
        %v1720 = vadd.f32 %v1527, %v1719
        %v1721 = vpop.f32.mrf.mxu0
        %v1722 = vadd.f32 %v1529, %v1721
        %1723 = vmatprep.mubr.bf16.mxu0 %v543
        %1724 = vmatmul.mubr.bf16.gmra.mxu0 %v542
        %v1725 = vpop.f32.mrf.mxu0
        %v1726 = vadd.f32 %v1533, %v1725
        %v1727 = vpop.f32.mrf.mxu0
        %v1728 = vadd.f32 %v1535, %v1727
        %v1729 = vpop.f32.mrf.mxu0
        %v1730 = vadd.f32 %v1537, %v1729
        %v1731 = vpop.f32.mrf.mxu0
        %v1732 = vadd.f32 %v1539, %v1731
        %1733 = vmatprep.mubr.bf16.mxu0 %v550
        %1734 = vmatmul.mubr.bf16.gmra.mxu0 %v549
        %v1735 = vpop.f32.mrf.mxu0
        %v1736 = vadd.f32 %v1543, %v1735
        %v1737 = vpop.f32.mrf.mxu0
        %v1738 = vadd.f32 %v1545, %v1737
        %v1739 = vpop.f32.mrf.mxu0
        %v1740 = vadd.f32 %v1547, %v1739
        %v1741 = vpop.f32.mrf.mxu0
        %v1742 = vadd.f32 %v1549, %v1741
        %1743 = vmatprep.mubr.bf16.mxu0 %v557
        %1744 = vmatmul.mubr.bf16.gmra.mxu0 %v556
        %v1745 = vpop.f32.mrf.mxu0
        %v1746 = vadd.f32 %v1553, %v1745
        %v1747 = vpop.f32.mrf.mxu0
        %v1748 = vadd.f32 %v1555, %v1747
        %v1749 = vpop.f32.mrf.mxu0
        %v1750 = vadd.f32 %v1557, %v1749
        %v1751 = vpop.f32.mrf.mxu0
        %v1752 = vadd.f32 %v1559, %v1751
        %1753 = vmatprep.mubr.bf16.mxu0 %v564
        %1754 = vmatmul.mubr.bf16.gmra.mxu0 %v563
        %v1755 = vpop.f32.mrf.mxu0
        %v1756 = vadd.f32 %v1563, %v1755
        %v1757 = vpop.f32.mrf.mxu0
        %v1758 = vadd.f32 %v1565, %v1757
        %v1759 = vpop.f32.mrf.mxu0
        %v1760 = vadd.f32 %v1567, %v1759
        %v1761 = vpop.f32.mrf.mxu0
        %v1762 = vadd.f32 %v1569, %v1761
        %1763 = vmatprep.mubr.bf16.mxu0 %v571
        %1764 = vmatmul.mubr.bf16.gmra.mxu0 %v570
        %v1765 = vpop.f32.mrf.mxu0
        %v1766 = vadd.f32 %v1573, %v1765
        %v1767 = vpop.f32.mrf.mxu0
        %v1768 = vadd.f32 %v1575, %v1767
        %v1769 = vpop.f32.mrf.mxu0
        %v1770 = vadd.f32 %v1577, %v1769
        %v1771 = vpop.f32.mrf.mxu0
        %v1772 = vadd.f32 %v1579, %v1771
        %1773 = vmatprep.mubr.bf16.mxu0 %v578
        %1774 = vmatmul.mubr.bf16.gmra.mxu0 %v577
        %v1775 = vpop.f32.mrf.mxu0
        %v1776 = vadd.f32 %v1583, %v1775
        %v1777 = vpop.f32.mrf.mxu0
        %v1778 = vadd.f32 %v1585, %v1777
        %v1779 = vpop.f32.mrf.mxu0
        %v1780 = vadd.f32 %v1587, %v1779
        %v1781 = vpop.f32.mrf.mxu0
        %v1782 = vadd.f32 %v1589, %v1781
        %1783 = vmatprep.mubr.bf16.mxu0 %v585
        %1784 = vmatmul.mubr.bf16.gmra.mxu0 %v584
        %v1785 = vpop.f32.mrf.mxu0
        %v1786 = vadd.f32 %v1593, %v1785
        %v1787 = vpop.f32.mrf.mxu0
        %v1788 = vadd.f32 %v1595, %v1787
        %v1789 = vpop.f32.mrf.mxu0
        %v1790 = vadd.f32 %v1597, %v1789
        %v1791 = vpop.f32.mrf.mxu0
        %v1792 = vadd.f32 %v1599, %v1791
        %1793 = vmatprep.mubr.bf16.mxu0 %v592
        %1794 = vmatmul.mubr.bf16.gmra.mxu0 %v591
        %v1795 = vpop.f32.mrf.mxu0
        %v1796 = vadd.f32 %v1603, %v1795
        %v1797 = vpop.f32.mrf.mxu0
        %v1798 = vadd.f32 %v1605, %v1797
        %v1799 = vpop.f32.mrf.mxu0
        %v1800 = vadd.f32 %v1607, %v1799
        %v1801 = vpop.f32.mrf.mxu0
        %v1802 = vadd.f32 %v1609, %v1801
        %1803 = vmatprep.mubr.bf16.mxu0 %v599
        %1804 = vmatmul.mubr.bf16.gmra.mxu0 %v598
        %v1805 = vpop.f32.mrf.mxu0
        %v1806 = vadd.f32 %v1613, %v1805
        %v1807 = vpop.f32.mrf.mxu0
        %v1808 = vadd.f32 %v1615, %v1807
        %v1809 = vpop.f32.mrf.mxu0
        %v1810 = vadd.f32 %v1617, %v1809
        %v1811 = vpop.f32.mrf.mxu0
        %v1812 = vadd.f32 %v1619, %v1811
        %1813 = vmatprep.mubr.bf16.mxu0 %v606
        %1814 = vmatmul.mubr.bf16.gmra.mxu0 %v605
        %v1815 = vpop.f32.mrf.mxu0
        %v1816 = vadd.f32 %v1623, %v1815
        %v1817 = vpop.f32.mrf.mxu0
        %v1818 = vadd.f32 %v1625, %v1817
        %v1819 = vpop.f32.mrf.mxu0
        %v1820 = vadd.f32 %v1627, %v1819
        %v1821 = vpop.f32.mrf.mxu0
        %v1822 = vadd.f32 %v1629, %v1821
        %1823 = vmatprep.mubr.bf16.mxu0 %v613
        %1824 = vmatmul.mubr.bf16.gmra.mxu0 %v612
        %v1825 = vpop.f32.mrf.mxu0
        %v1826 = vadd.f32 %v1633, %v1825
        %v1827 = vpop.f32.mrf.mxu0
        %v1828 = vadd.f32 %v1635, %v1827
        %v1829 = vpop.f32.mrf.mxu0
        %v1830 = vadd.f32 %v1637, %v1829
        %v1831 = vpop.f32.mrf.mxu0
        %v1832 = vadd.f32 %v1639, %v1831
        %1833 = vmatprep.mubr.bf16.mxu0 %v620
        %1834 = vmatmul.mubr.bf16.gmra.mxu0 %v619
        %v1835 = vpop.f32.mrf.mxu0
        %v1836 = vadd.f32 %v1643, %v1835
        %v1837 = vpop.f32.mrf.mxu0
        %v1838 = vadd.f32 %v1645, %v1837
        %v1839 = vpop.f32.mrf.mxu0
        %v1840 = vadd.f32 %v1647, %v1839
        %v1841 = vpop.f32.mrf.mxu0
        %v1842 = vadd.f32 %v1649, %v1841
        %1843 = vmatprep.mubr.bf16.mxu0 %v627
        %1844 = vmatmul.mubr.bf16.gmra.mxu0 %v626
        %v1845 = vpop.f32.mrf.mxu0
        %v1846 = vadd.f32 %v1653, %v1845
        %v1847 = vpop.f32.mrf.mxu0
        %v1848 = vadd.f32 %v1655, %v1847
        %v1849 = vpop.f32.mrf.mxu0
        %v1850 = vadd.f32 %v1657, %v1849
        %v1851 = vpop.f32.mrf.mxu0
        %v1852 = vadd.f32 %v1659, %v1851
        %1853 = vmatprep.mubr.bf16.mxu0 %v634
        %1854 = vmatmul.mubr.bf16.gmra.mxu0 %v633
        %v1855 = vpop.f32.mrf.mxu0
        %v1856 = vadd.f32 %v1663, %v1855
        %v1857 = vpop.f32.mrf.mxu0
        %v1858 = vadd.f32 %v1665, %v1857
        %v1859 = vpop.f32.mrf.mxu0
        %v1860 = vadd.f32 %v1667, %v1859
        %v1861 = vpop.f32.mrf.mxu0
        %v1862 = vadd.f32 %v1669, %v1861
        %1863 = vdwg.mxu0
        %1864 = vmatprep.subr.bf16.mxu0 0
        %1865 = vmatpush1.bf16.msra.mxu0 0
        %1866 = vmatprep.subr.bf16.mxu0 0
        %1867 = vmatpush1.bf16.msra.mxu0 0
        %1868 = vmatprep.subr.bf16.mxu0 0
        %1869 = vmatpush1.bf16.msra.mxu0 0
        %1870 = vmatprep.subr.bf16.mxu0 0
        %1871 = vmatpush1.bf16.msra.mxu0 0
        %1872 = vmatprep.subr.bf16.mxu0 0
        %1873 = vmatpush1.bf16.msra.mxu0 0
        %1874 = vmatprep.subr.bf16.mxu0 0
        %1875 = vmatpush1.bf16.msra.mxu0 0
        %1876 = vmatprep.subr.bf16.mxu0 0
        %1877 = vmatpush1.bf16.msra.mxu0 0
        %1878 = vmatprep.subr.bf16.mxu0 %v1137
        %1879 = vmatpush1.bf16.msra.mxu0 %v1136
        %1880 = vmatprep.subr.bf16.mxu0 0
        %1881 = vmatpush2.bf16.msra.mxu0 0
        %1882 = vmatprep.subr.bf16.mxu0 0
        %1883 = vmatpush2.bf16.msra.mxu0 0
        %1884 = vmatprep.subr.bf16.mxu0 0
        %1885 = vmatpush2.bf16.msra.mxu0 0
        %1886 = vmatprep.subr.bf16.mxu0 0
        %1887 = vmatpush2.bf16.msra.mxu0 0
        %1888 = vmatprep.subr.bf16.mxu0 0
        %1889 = vmatpush2.bf16.msra.mxu0 0
        %1890 = vmatprep.subr.bf16.mxu0 0
        %1891 = vmatpush2.bf16.msra.mxu0 0
        %1892 = vmatprep.subr.bf16.mxu0 0
        %1893 = vmatpush2.bf16.msra.mxu0 0
        %1894 = vmatprep.subr.bf16.mxu0 0
        %1895 = vmatpush2.bf16.msra.mxu0 0
        %1896 = vmatprep.mubr.bf16.mxu0 0
        %1897 = vmatmul.mubr.bf16.gmra.mxu0 %v1238
        %v1898 = vpop.f32.mrf.mxu0
        %v1899 = vadd.f32 %v1706, %v1898
        %v1900 = vpop.f32.mrf.mxu0
        %v1901 = vadd.f32 %v1708, %v1900
        %v1902 = vpop.f32.mrf.mxu0
        %v1903 = vadd.f32 %v1710, %v1902
        %v1904 = vpop.f32.mrf.mxu0
        %v1905 = vadd.f32 %v1712, %v1904
        %1906 = vmatprep.mubr.bf16.mxu0 0
        %1907 = vmatmul.mubr.bf16.gmra.mxu0 %v1241
        %v1908 = vpop.f32.mrf.mxu0
        %v1909 = vadd.f32 %v1716, %v1908
        %v1910 = vpop.f32.mrf.mxu0
        %v1911 = vadd.f32 %v1718, %v1910
        %v1912 = vpop.f32.mrf.mxu0
        %v1913 = vadd.f32 %v1720, %v1912
        %v1914 = vpop.f32.mrf.mxu0
        %v1915 = vadd.f32 %v1722, %v1914
        %1916 = vmatprep.mubr.bf16.mxu0 0
        %1917 = vmatmul.mubr.bf16.gmra.mxu0 %v1244
        %v1918 = vpop.f32.mrf.mxu0
        %v1919 = vadd.f32 %v1726, %v1918
        %v1920 = vpop.f32.mrf.mxu0
        %v1921 = vadd.f32 %v1728, %v1920
        %v1922 = vpop.f32.mrf.mxu0
        %v1923 = vadd.f32 %v1730, %v1922
        %v1924 = vpop.f32.mrf.mxu0
        %v1925 = vadd.f32 %v1732, %v1924
        %1926 = vmatprep.mubr.bf16.mxu0 0
        %1927 = vmatmul.mubr.bf16.gmra.mxu0 %v1247
        %v1928 = vpop.f32.mrf.mxu0
        %v1929 = vadd.f32 %v1736, %v1928
        %v1930 = vpop.f32.mrf.mxu0
        %v1931 = vadd.f32 %v1738, %v1930
        %v1932 = vpop.f32.mrf.mxu0
        %v1933 = vadd.f32 %v1740, %v1932
        %v1934 = vpop.f32.mrf.mxu0
        %v1935 = vadd.f32 %v1742, %v1934
        %1936 = vmatprep.mubr.bf16.mxu0 0
        %1937 = vmatmul.mubr.bf16.gmra.mxu0 %v1250
        %v1938 = vpop.f32.mrf.mxu0
        %v1939 = vadd.f32 %v1746, %v1938
        %v1940 = vpop.f32.mrf.mxu0
        %v1941 = vadd.f32 %v1748, %v1940
        %v1942 = vpop.f32.mrf.mxu0
        %v1943 = vadd.f32 %v1750, %v1942
        %v1944 = vpop.f32.mrf.mxu0
        %v1945 = vadd.f32 %v1752, %v1944
        %1946 = vmatprep.mubr.bf16.mxu0 0
        %1947 = vmatmul.mubr.bf16.gmra.mxu0 %v1253
        %v1948 = vpop.f32.mrf.mxu0
        %v1949 = vadd.f32 %v1756, %v1948
        %v1950 = vpop.f32.mrf.mxu0
        %v1951 = vadd.f32 %v1758, %v1950
        %v1952 = vpop.f32.mrf.mxu0
        %v1953 = vadd.f32 %v1760, %v1952
        %v1954 = vpop.f32.mrf.mxu0
        %v1955 = vadd.f32 %v1762, %v1954
        %1956 = vmatprep.mubr.bf16.mxu0 0
        %1957 = vmatmul.mubr.bf16.gmra.mxu0 %v1256
        %v1958 = vpop.f32.mrf.mxu0
        %v1959 = vadd.f32 %v1766, %v1958
        %v1960 = vpop.f32.mrf.mxu0
        %v1961 = vadd.f32 %v1768, %v1960
        %v1962 = vpop.f32.mrf.mxu0
        %v1963 = vadd.f32 %v1770, %v1962
        %v1964 = vpop.f32.mrf.mxu0
        %v1965 = vadd.f32 %v1772, %v1964
        %1966 = vmatprep.mubr.bf16.mxu0 0
        %1967 = vmatmul.mubr.bf16.gmra.mxu0 %v1259
        %v1968 = vpop.f32.mrf.mxu0
        %v1969 = vadd.f32 %v1776, %v1968
        %v1970 = vpop.f32.mrf.mxu0
        %v1971 = vadd.f32 %v1778, %v1970
        %v1972 = vpop.f32.mrf.mxu0
        %v1973 = vadd.f32 %v1780, %v1972
        %v1974 = vpop.f32.mrf.mxu0
        %v1975 = vadd.f32 %v1782, %v1974
        %1976 = vmatprep.mubr.bf16.mxu0 0
        %1977 = vmatmul.mubr.bf16.gmra.mxu0 %v1262
        %v1978 = vpop.f32.mrf.mxu0
        %v1979 = vadd.f32 %v1786, %v1978
        %v1980 = vpop.f32.mrf.mxu0
        %v1981 = vadd.f32 %v1788, %v1980
        %v1982 = vpop.f32.mrf.mxu0
        %v1983 = vadd.f32 %v1790, %v1982
        %v1984 = vpop.f32.mrf.mxu0
        %v1985 = vadd.f32 %v1792, %v1984
        %1986 = vmatprep.mubr.bf16.mxu0 0
        %1987 = vmatmul.mubr.bf16.gmra.mxu0 %v1265
        %v1988 = vpop.f32.mrf.mxu0
        %v1989 = vadd.f32 %v1796, %v1988
        %v1990 = vpop.f32.mrf.mxu0
        %v1991 = vadd.f32 %v1798, %v1990
        %v1992 = vpop.f32.mrf.mxu0
        %v1993 = vadd.f32 %v1800, %v1992
        %v1994 = vpop.f32.mrf.mxu0
        %v1995 = vadd.f32 %v1802, %v1994
        %1996 = vmatprep.mubr.bf16.mxu0 0
        %1997 = vmatmul.mubr.bf16.gmra.mxu0 %v1268
        %v1998 = vpop.f32.mrf.mxu0
        %v1999 = vadd.f32 %v1806, %v1998
        %v2000 = vpop.f32.mrf.mxu0
        %v2001 = vadd.f32 %v1808, %v2000
        %v2002 = vpop.f32.mrf.mxu0
        %v2003 = vadd.f32 %v1810, %v2002
        %v2004 = vpop.f32.mrf.mxu0
        %v2005 = vadd.f32 %v1812, %v2004
        %2006 = vmatprep.mubr.bf16.mxu0 0
        %2007 = vmatmul.mubr.bf16.gmra.mxu0 %v1271
        %v2008 = vpop.f32.mrf.mxu0
        %v2009 = vadd.f32 %v1816, %v2008
        %v2010 = vpop.f32.mrf.mxu0
        %v2011 = vadd.f32 %v1818, %v2010
        %v2012 = vpop.f32.mrf.mxu0
        %v2013 = vadd.f32 %v1820, %v2012
        %v2014 = vpop.f32.mrf.mxu0
        %v2015 = vadd.f32 %v1822, %v2014
        %2016 = vmatprep.mubr.bf16.mxu0 0
        %2017 = vmatmul.mubr.bf16.gmra.mxu0 %v1274
        %v2018 = vpop.f32.mrf.mxu0
        %v2019 = vadd.f32 %v1826, %v2018
        %v2020 = vpop.f32.mrf.mxu0
        %v2021 = vadd.f32 %v1828, %v2020
        %v2022 = vpop.f32.mrf.mxu0
        %v2023 = vadd.f32 %v1830, %v2022
        %v2024 = vpop.f32.mrf.mxu0
        %v2025 = vadd.f32 %v1832, %v2024
        %2026 = vmatprep.mubr.bf16.mxu0 0
        %2027 = vmatmul.mubr.bf16.gmra.mxu0 %v1277
        %v2028 = vpop.f32.mrf.mxu0
        %v2029 = vadd.f32 %v1836, %v2028
        %v2030 = vpop.f32.mrf.mxu0
        %v2031 = vadd.f32 %v1838, %v2030
        %v2032 = vpop.f32.mrf.mxu0
        %v2033 = vadd.f32 %v1840, %v2032
        %v2034 = vpop.f32.mrf.mxu0
        %v2035 = vadd.f32 %v1842, %v2034
        %2036 = vmatprep.mubr.bf16.mxu0 0
        %2037 = vmatmul.mubr.bf16.gmra.mxu0 %v1280
        %v2038 = vpop.f32.mrf.mxu0
        %v2039 = vadd.f32 %v1846, %v2038
        %v2040 = vpop.f32.mrf.mxu0
        %v2041 = vadd.f32 %v1848, %v2040
        %v2042 = vpop.f32.mrf.mxu0
        %v2043 = vadd.f32 %v1850, %v2042
        %v2044 = vpop.f32.mrf.mxu0
        %v2045 = vadd.f32 %v1852, %v2044
        %2046 = vmatprep.mubr.bf16.mxu0 0
        %2047 = vmatmul.mubr.bf16.gmra.mxu0 %v1283
        %v2048 = vpop.f32.mrf.mxu0
        %v2049 = vadd.f32 %v1856, %v2048
        %v2050 = vpop.f32.mrf.mxu0
        %v2051 = vadd.f32 %v1858, %v2050
        %v2052 = vpop.f32.mrf.mxu0
        %v2053 = vadd.f32 %v1860, %v2052
        %v2054 = vpop.f32.mrf.mxu0
        %v2055 = vadd.f32 %v1862, %v2054
        %2056 = vdwg.mxu0
        %vm2057 = vcmp.ge.f32.partialorder %v1899, 0.0
        %vm2058 = vcmp.ge.f32.partialorder %v1901, 0.0
        %vm2059 = vcmp.ge.f32.partialorder %v1903, 0.0
        %vm2060 = vcmp.ge.f32.partialorder %v1905, 0.0
        %vm2061 = vcmp.ge.f32.partialorder %v1909, 0.0
        %vm2062 = vcmp.ge.f32.partialorder %v1911, 0.0
        %vm2063 = vcmp.ge.f32.partialorder %v1913, 0.0
        %vm2064 = vcmp.ge.f32.partialorder %v1915, 0.0
        %vm2065 = vcmp.ge.f32.partialorder %v1919, 0.0
        %vm2066 = vcmp.ge.f32.partialorder %v1921, 0.0
        %vm2067 = vcmp.ge.f32.partialorder %v1923, 0.0
        %vm2068 = vcmp.ge.f32.partialorder %v1925, 0.0
        %vm2069 = vcmp.ge.f32.partialorder %v1929, 0.0
        %vm2070 = vcmp.ge.f32.partialorder %v1931, 0.0
        %vm2071 = vcmp.ge.f32.partialorder %v1933, 0.0
        %vm2072 = vcmp.ge.f32.partialorder %v1935, 0.0
        %vm2073 = vcmp.ge.f32.partialorder %v1939, 0.0
        %vm2074 = vcmp.ge.f32.partialorder %v1941, 0.0
        %vm2075 = vcmp.ge.f32.partialorder %v1943, 0.0
        %vm2076 = vcmp.ge.f32.partialorder %v1945, 0.0
        %vm2077 = vcmp.ge.f32.partialorder %v1949, 0.0
        %vm2078 = vcmp.ge.f32.partialorder %v1951, 0.0
        %vm2079 = vcmp.ge.f32.partialorder %v1953, 0.0
        %vm2080 = vcmp.ge.f32.partialorder %v1955, 0.0
        %vm2081 = vcmp.ge.f32.partialorder %v1959, 0.0
        %vm2082 = vcmp.ge.f32.partialorder %v1961, 0.0
        %vm2083 = vcmp.ge.f32.partialorder %v1963, 0.0
        %vm2084 = vcmp.ge.f32.partialorder %v1965, 0.0
        %vm2085 = vcmp.ge.f32.partialorder %v1969, 0.0
        %vm2086 = vcmp.ge.f32.partialorder %v1971, 0.0
        %vm2087 = vcmp.ge.f32.partialorder %v1973, 0.0
        %vm2088 = vcmp.ge.f32.partialorder %v1975, 0.0
        %vm2089 = vcmp.ge.f32.partialorder %v1979, 0.0
        %vm2090 = vcmp.ge.f32.partialorder %v1981, 0.0
        %vm2091 = vcmp.ge.f32.partialorder %v1983, 0.0
        %vm2092 = vcmp.ge.f32.partialorder %v1985, 0.0
        %vm2093 = vcmp.ge.f32.partialorder %v1989, 0.0
        %vm2094 = vcmp.ge.f32.partialorder %v1991, 0.0
        %vm2095 = vcmp.ge.f32.partialorder %v1993, 0.0
        %vm2096 = vcmp.ge.f32.partialorder %v1995, 0.0
        %vm2097 = vcmp.ge.f32.partialorder %v1999, 0.0
        %vm2098 = vcmp.ge.f32.partialorder %v2001, 0.0
        %vm2099 = vcmp.ge.f32.partialorder %v2003, 0.0
        %vm2100 = vcmp.ge.f32.partialorder %v2005, 0.0
        %vm2101 = vcmp.ge.f32.partialorder %v2009, 0.0
        %vm2102 = vcmp.ge.f32.partialorder %v2011, 0.0
        %vm2103 = vcmp.ge.f32.partialorder %v2013, 0.0
        %vm2104 = vcmp.ge.f32.partialorder %v2015, 0.0
        %vm2105 = vcmp.ge.f32.partialorder %v2019, 0.0
        %vm2106 = vcmp.ge.f32.partialorder %v2021, 0.0
        %vm2107 = vcmp.ge.f32.partialorder %v2023, 0.0
        %vm2108 = vcmp.ge.f32.partialorder %v2025, 0.0
        %vm2109 = vcmp.ge.f32.partialorder %v2029, 0.0
        %vm2110 = vcmp.ge.f32.partialorder %v2031, 0.0
        %vm2111 = vcmp.ge.f32.partialorder %v2033, 0.0
        %vm2112 = vcmp.ge.f32.partialorder %v2035, 0.0
        %vm2113 = vcmp.ge.f32.partialorder %v2039, 0.0
        %vm2114 = vcmp.ge.f32.partialorder %v2041, 0.0
        %vm2115 = vcmp.ge.f32.partialorder %v2043, 0.0
        %vm2116 = vcmp.ge.f32.partialorder %v2045, 0.0
        %vm2117 = vcmp.ge.f32.partialorder %v2049, 0.0
        %vm2118 = vcmp.ge.f32.partialorder %v2051, 0.0
        %vm2119 = vcmp.ge.f32.partialorder %v2053, 0.0
        %vm2120 = vcmp.ge.f32.partialorder %v2055, 0.0
        %v2121 = vmul.f32 %v1899, 0.02
        %v2122 = vmul.f32 %v1901, 0.02
        %v2123 = vmul.f32 %v1903, 0.02
        %v2124 = vmul.f32 %v1905, 0.02
        %v2125 = vmul.f32 %v1909, 0.02
        %v2126 = vmul.f32 %v1911, 0.02
        %v2127 = vmul.f32 %v1913, 0.02
        %v2128 = vmul.f32 %v1915, 0.02
        %v2129 = vmul.f32 %v1919, 0.02
        %v2130 = vmul.f32 %v1921, 0.02
        %v2131 = vmul.f32 %v1923, 0.02
        %v2132 = vmul.f32 %v1925, 0.02
        %v2133 = vmul.f32 %v1929, 0.02
        %v2134 = vmul.f32 %v1931, 0.02
        %v2135 = vmul.f32 %v1933, 0.02
        %v2136 = vmul.f32 %v1935, 0.02
        %v2137 = vmul.f32 %v1939, 0.02
        %v2138 = vmul.f32 %v1941, 0.02
        %v2139 = vmul.f32 %v1943, 0.02
        %v2140 = vmul.f32 %v1945, 0.02
        %v2141 = vmul.f32 %v1949, 0.02
        %v2142 = vmul.f32 %v1951, 0.02
        %v2143 = vmul.f32 %v1953, 0.02
        %v2144 = vmul.f32 %v1955, 0.02
        %v2145 = vmul.f32 %v1959, 0.02
        %v2146 = vmul.f32 %v1961, 0.02
        %v2147 = vmul.f32 %v1963, 0.02
        %v2148 = vmul.f32 %v1965, 0.02
        %v2149 = vmul.f32 %v1969, 0.02
        %v2150 = vmul.f32 %v1971, 0.02
        %v2151 = vmul.f32 %v1973, 0.02
        %v2152 = vmul.f32 %v1975, 0.02
        %v2153 = vmul.f32 %v1979, 0.02
        %v2154 = vmul.f32 %v1981, 0.02
        %v2155 = vmul.f32 %v1983, 0.02
        %v2156 = vmul.f32 %v1985, 0.02
        %v2157 = vmul.f32 %v1989, 0.02
        %v2158 = vmul.f32 %v1991, 0.02
        %v2159 = vmul.f32 %v1993, 0.02
        %v2160 = vmul.f32 %v1995, 0.02
        %v2161 = vmul.f32 %v1999, 0.02
        %v2162 = vmul.f32 %v2001, 0.02
        %v2163 = vmul.f32 %v2003, 0.02
        %v2164 = vmul.f32 %v2005, 0.02
        %v2165 = vmul.f32 %v2009, 0.02
        %v2166 = vmul.f32 %v2011, 0.02
        %v2167 = vmul.f32 %v2013, 0.02
        %v2168 = vmul.f32 %v2015, 0.02
        %v2169 = vmul.f32 %v2019, 0.02
        %v2170 = vmul.f32 %v2021, 0.02
        %v2171 = vmul.f32 %v2023, 0.02
        %v2172 = vmul.f32 %v2025, 0.02
        %v2173 = vmul.f32 %v2029, 0.02
        %v2174 = vmul.f32 %v2031, 0.02
        %v2175 = vmul.f32 %v2033, 0.02
        %v2176 = vmul.f32 %v2035, 0.02
        %v2177 = vmul.f32 %v2039, 0.02
        %v2178 = vmul.f32 %v2041, 0.02
        %v2179 = vmul.f32 %v2043, 0.02
        %v2180 = vmul.f32 %v2045, 0.02
        %v2181 = vmul.f32 %v2049, 0.02
        %v2182 = vmul.f32 %v2051, 0.02
        %v2183 = vmul.f32 %v2053, 0.02
        %v2184 = vmul.f32 %v2055, 0.02
        %v2185 = vsel %vm2057, %v1899, %v2121
        %v2186 = vsel %vm2058, %v1901, %v2122
        %v2187 = vsel %vm2059, %v1903, %v2123
        %v2188 = vsel %vm2060, %v1905, %v2124
        %v2189 = vsel %vm2061, %v1909, %v2125
        %v2190 = vsel %vm2062, %v1911, %v2126
        %v2191 = vsel %vm2063, %v1913, %v2127
        %v2192 = vsel %vm2064, %v1915, %v2128
        %v2193 = vsel %vm2065, %v1919, %v2129
        %v2194 = vsel %vm2066, %v1921, %v2130
        %v2195 = vsel %vm2067, %v1923, %v2131
        %v2196 = vsel %vm2068, %v1925, %v2132
        %v2197 = vsel %vm2069, %v1929, %v2133
        %v2198 = vsel %vm2070, %v1931, %v2134
        %v2199 = vsel %vm2071, %v1933, %v2135
        %v2200 = vsel %vm2072, %v1935, %v2136
        %v2201 = vsel %vm2073, %v1939, %v2137
        %v2202 = vsel %vm2074, %v1941, %v2138
        %v2203 = vsel %vm2075, %v1943, %v2139
        %v2204 = vsel %vm2076, %v1945, %v2140
        %v2205 = vsel %vm2077, %v1949, %v2141
        %v2206 = vsel %vm2078, %v1951, %v2142
        %v2207 = vsel %vm2079, %v1953, %v2143
        %v2208 = vsel %vm2080, %v1955, %v2144
        %v2209 = vsel %vm2081, %v1959, %v2145
        %v2210 = vsel %vm2082, %v1961, %v2146
        %v2211 = vsel %vm2083, %v1963, %v2147
        %v2212 = vsel %vm2084, %v1965, %v2148
        %v2213 = vsel %vm2085, %v1969, %v2149
        %v2214 = vsel %vm2086, %v1971, %v2150
        %v2215 = vsel %vm2087, %v1973, %v2151
        %v2216 = vsel %vm2088, %v1975, %v2152
        %v2217 = vsel %vm2089, %v1979, %v2153
        %v2218 = vsel %vm2090, %v1981, %v2154
        %v2219 = vsel %vm2091, %v1983, %v2155
        %v2220 = vsel %vm2092, %v1985, %v2156
        %v2221 = vsel %vm2093, %v1989, %v2157
        %v2222 = vsel %vm2094, %v1991, %v2158
        %v2223 = vsel %vm2095, %v1993, %v2159
        %v2224 = vsel %vm2096, %v1995, %v2160
        %v2225 = vsel %vm2097, %v1999, %v2161
        %v2226 = vsel %vm2098, %v2001, %v2162
        %v2227 = vsel %vm2099, %v2003, %v2163
        %v2228 = vsel %vm2100, %v2005, %v2164
        %v2229 = vsel %vm2101, %v2009, %v2165
        %v2230 = vsel %vm2102, %v2011, %v2166
        %v2231 = vsel %vm2103, %v2013, %v2167
        %v2232 = vsel %vm2104, %v2015, %v2168
        %v2233 = vsel %vm2105, %v2019, %v2169
        %v2234 = vsel %vm2106, %v2021, %v2170
        %v2235 = vsel %vm2107, %v2023, %v2171
        %v2236 = vsel %vm2108, %v2025, %v2172
        %v2237 = vsel %vm2109, %v2029, %v2173
        %v2238 = vsel %vm2110, %v2031, %v2174
        %v2239 = vsel %vm2111, %v2033, %v2175
        %v2240 = vsel %vm2112, %v2035, %v2176
        %v2241 = vsel %vm2113, %v2039, %v2177
        %v2242 = vsel %vm2114, %v2041, %v2178
        %v2243 = vsel %vm2115, %v2043, %v2179
        %v2244 = vsel %vm2116, %v2045, %v2180
        %v2245 = vsel %vm2117, %v2049, %v2181
        %v2246 = vsel %vm2118, %v2051, %v2182
        %v2247 = vsel %vm2119, %v2053, %v2183
        %v2248 = vsel %vm2120, %v2055, %v2184
        %v2249 = vadd.f32 %v2185, %v2186
        %2250 = vadd.xlane.f32.xlu0 %v2249
        %v2251 = vpop.xlane.xlu0 %2250
        %v2252 = vadd.f32 %v2187, %v2188
        %2253 = vadd.xlane.f32.xlu0 %v2252
        %v2254 = vpop.xlane.xlu0 %2253
        %v2255 = vadd.f32 %v2189, %v2190
        %2256 = vadd.xlane.f32.xlu0 %v2255
        %v2257 = vpop.xlane.xlu0 %2256
        %v2258 = vadd.f32 %v2191, %v2192
        %2259 = vadd.xlane.f32.xlu0 %v2258
        %v2260 = vpop.xlane.xlu0 %2259
        %v2261 = vadd.f32 %v2193, %v2194
        %2262 = vadd.xlane.f32.xlu0 %v2261
        %v2263 = vpop.xlane.xlu0 %2262
        %v2264 = vadd.f32 %v2195, %v2196
        %2265 = vadd.xlane.f32.xlu0 %v2264
        %v2266 = vpop.xlane.xlu0 %2265
        %v2267 = vadd.f32 %v2197, %v2198
        %2268 = vadd.xlane.f32.xlu0 %v2267
        %v2269 = vpop.xlane.xlu0 %2268
        %v2270 = vadd.f32 %v2199, %v2200
        %2271 = vadd.xlane.f32.xlu0 %v2270
        %v2272 = vpop.xlane.xlu0 %2271
        %v2273 = vadd.f32 %v2201, %v2202
        %2274 = vadd.xlane.f32.xlu0 %v2273
        %v2275 = vpop.xlane.xlu0 %2274
        %v2276 = vadd.f32 %v2203, %v2204
        %2277 = vadd.xlane.f32.xlu0 %v2276
        %v2278 = vpop.xlane.xlu0 %2277
        %v2279 = vadd.f32 %v2205, %v2206
        %2280 = vadd.xlane.f32.xlu0 %v2279
        %v2281 = vpop.xlane.xlu0 %2280
        %v2282 = vadd.f32 %v2207, %v2208
        %2283 = vadd.xlane.f32.xlu0 %v2282
        %v2284 = vpop.xlane.xlu0 %2283
        %v2285 = vadd.f32 %v2209, %v2210
        %2286 = vadd.xlane.f32.xlu0 %v2285
        %v2287 = vpop.xlane.xlu0 %2286
        %v2288 = vadd.f32 %v2211, %v2212
        %2289 = vadd.xlane.f32.xlu0 %v2288
        %v2290 = vpop.xlane.xlu0 %2289
        %v2291 = vadd.f32 %v2213, %v2214
        %2292 = vadd.xlane.f32.xlu0 %v2291
        %v2293 = vpop.xlane.xlu0 %2292
        %v2294 = vadd.f32 %v2215, %v2216
        %2295 = vadd.xlane.f32.xlu0 %v2294
        %v2296 = vpop.xlane.xlu0 %2295
        %v2297 = vadd.f32 %v2217, %v2218
        %2298 = vadd.xlane.f32.xlu0 %v2297
        %v2299 = vpop.xlane.xlu0 %2298
        %v2300 = vadd.f32 %v2219, %v2220
        %2301 = vadd.xlane.f32.xlu0 %v2300
        %v2302 = vpop.xlane.xlu0 %2301
        %v2303 = vadd.f32 %v2221, %v2222
        %2304 = vadd.xlane.f32.xlu0 %v2303
        %v2305 = vpop.xlane.xlu0 %2304
        %v2306 = vadd.f32 %v2223, %v2224
        %2307 = vadd.xlane.f32.xlu0 %v2306
        %v2308 = vpop.xlane.xlu0 %2307
        %v2309 = vadd.f32 %v2225, %v2226
        %2310 = vadd.xlane.f32.xlu0 %v2309
        %v2311 = vpop.xlane.xlu0 %2310
        %v2312 = vadd.f32 %v2227, %v2228
        %2313 = vadd.xlane.f32.xlu0 %v2312
        %v2314 = vpop.xlane.xlu0 %2313
        %v2315 = vadd.f32 %v2229, %v2230
        %2316 = vadd.xlane.f32.xlu0 %v2315
        %v2317 = vpop.xlane.xlu0 %2316
        %v2318 = vadd.f32 %v2231, %v2232
        %2319 = vadd.xlane.f32.xlu0 %v2318
        %v2320 = vpop.xlane.xlu0 %2319
        %v2321 = vadd.f32 %v2233, %v2234
        %2322 = vadd.xlane.f32.xlu0 %v2321
        %v2323 = vpop.xlane.xlu0 %2322
        %v2324 = vadd.f32 %v2235, %v2236
        %2325 = vadd.xlane.f32.xlu0 %v2324
        %v2326 = vpop.xlane.xlu0 %2325
        %v2327 = vadd.f32 %v2237, %v2238
        %2328 = vadd.xlane.f32.xlu0 %v2327
        %v2329 = vpop.xlane.xlu0 %2328
        %v2330 = vadd.f32 %v2239, %v2240
        %2331 = vadd.xlane.f32.xlu0 %v2330
        %v2332 = vpop.xlane.xlu0 %2331
        %v2333 = vadd.f32 %v2241, %v2242
        %2334 = vadd.xlane.f32.xlu0 %v2333
        %v2335 = vpop.xlane.xlu0 %2334
        %v2336 = vadd.f32 %v2243, %v2244
        %2337 = vadd.xlane.f32.xlu0 %v2336
        %v2338 = vpop.xlane.xlu0 %2337
        %v2339 = vadd.f32 %v2245, %v2246
        %2340 = vadd.xlane.f32.xlu0 %v2339
        %v2341 = vpop.xlane.xlu0 %2340
        %v2342 = vadd.f32 %v2247, %v2248
        %2343 = vadd.xlane.f32.xlu0 %v2342
        %v2344 = vpop.xlane.xlu0 %2343
        %v2345 = vmul.f32 %v2251, 0.005
        %v2346 = vmul.f32 %v2254, 0.005
        %v2347 = vmul.f32 %v2257, 0.005
        %v2348 = vmul.f32 %v2260, 0.005
        %v2349 = vmul.f32 %v2263, 0.005
        %v2350 = vmul.f32 %v2266, 0.005
        %v2351 = vmul.f32 %v2269, 0.005
        %v2352 = vmul.f32 %v2272, 0.005
        %v2353 = vmul.f32 %v2275, 0.005
        %v2354 = vmul.f32 %v2278, 0.005
        %v2355 = vmul.f32 %v2281, 0.005
        %v2356 = vmul.f32 %v2284, 0.005
        %v2357 = vmul.f32 %v2287, 0.005
        %v2358 = vmul.f32 %v2290, 0.005
        %v2359 = vmul.f32 %v2293, 0.005
        %v2360 = vmul.f32 %v2296, 0.005
        %v2361 = vmul.f32 %v2299, 0.005
        %v2362 = vmul.f32 %v2302, 0.005
        %v2363 = vmul.f32 %v2305, 0.005
        %v2364 = vmul.f32 %v2308, 0.005
        %v2365 = vmul.f32 %v2311, 0.005
        %v2366 = vmul.f32 %v2314, 0.005
        %v2367 = vmul.f32 %v2317, 0.005
        %v2368 = vmul.f32 %v2320, 0.005
        %v2369 = vmul.f32 %v2323, 0.005
        %v2370 = vmul.f32 %v2326, 0.005
        %v2371 = vmul.f32 %v2329, 0.005
        %v2372 = vmul.f32 %v2332, 0.005
        %v2373 = vmul.f32 %v2335, 0.005
        %v2374 = vmul.f32 %v2338, 0.005
        %v2375 = vmul.f32 %v2341, 0.005
        %v2376 = vmul.f32 %v2344, 0.005
        %v2377 = vmul.f32 %v2185, %v2185
        %v2378 = vmul.f32 %v2186, %v2186
        %v2379 = vmul.f32 %v2187, %v2187
        %v2380 = vmul.f32 %v2188, %v2188
        %v2381 = vmul.f32 %v2189, %v2189
        %v2382 = vmul.f32 %v2190, %v2190
        %v2383 = vmul.f32 %v2191, %v2191
        %v2384 = vmul.f32 %v2192, %v2192
        %v2385 = vmul.f32 %v2193, %v2193
        %v2386 = vmul.f32 %v2194, %v2194
        %v2387 = vmul.f32 %v2195, %v2195
        %v2388 = vmul.f32 %v2196, %v2196
        %v2389 = vmul.f32 %v2197, %v2197
        %v2390 = vmul.f32 %v2198, %v2198
        %v2391 = vmul.f32 %v2199, %v2199
        %v2392 = vmul.f32 %v2200, %v2200
        %v2393 = vmul.f32 %v2201, %v2201
        %v2394 = vmul.f32 %v2202, %v2202
        %v2395 = vmul.f32 %v2203, %v2203
        %v2396 = vmul.f32 %v2204, %v2204
        %v2397 = vmul.f32 %v2205, %v2205
        %v2398 = vmul.f32 %v2206, %v2206
        %v2399 = vmul.f32 %v2207, %v2207
        %v2400 = vmul.f32 %v2208, %v2208
        %v2401 = vmul.f32 %v2209, %v2209
        %v2402 = vmul.f32 %v2210, %v2210
        %v2403 = vmul.f32 %v2211, %v2211
        %v2404 = vmul.f32 %v2212, %v2212
        %v2405 = vmul.f32 %v2213, %v2213
        %v2406 = vmul.f32 %v2214, %v2214
        %v2407 = vmul.f32 %v2215, %v2215
        %v2408 = vmul.f32 %v2216, %v2216
        %v2409 = vmul.f32 %v2217, %v2217
        %v2410 = vmul.f32 %v2218, %v2218
        %v2411 = vmul.f32 %v2219, %v2219
        %v2412 = vmul.f32 %v2220, %v2220
        %v2413 = vmul.f32 %v2221, %v2221
        %v2414 = vmul.f32 %v2222, %v2222
        %v2415 = vmul.f32 %v2223, %v2223
        %v2416 = vmul.f32 %v2224, %v2224
        %v2417 = vmul.f32 %v2225, %v2225
        %v2418 = vmul.f32 %v2226, %v2226
        %v2419 = vmul.f32 %v2227, %v2227
        %v2420 = vmul.f32 %v2228, %v2228
        %v2421 = vmul.f32 %v2229, %v2229
        %v2422 = vmul.f32 %v2230, %v2230
        %v2423 = vmul.f32 %v2231, %v2231
        %v2424 = vmul.f32 %v2232, %v2232
        %v2425 = vmul.f32 %v2233, %v2233
        %v2426 = vmul.f32 %v2234, %v2234
        %v2427 = vmul.f32 %v2235, %v2235
        %v2428 = vmul.f32 %v2236, %v2236
        %v2429 = vmul.f32 %v2237, %v2237
        %v2430 = vmul.f32 %v2238, %v2238
        %v2431 = vmul.f32 %v2239, %v2239
        %v2432 = vmul.f32 %v2240, %v2240
        %v2433 = vmul.f32 %v2241, %v2241
        %v2434 = vmul.f32 %v2242, %v2242
        %v2435 = vmul.f32 %v2243, %v2243
        %v2436 = vmul.f32 %v2244, %v2244
        %v2437 = vmul.f32 %v2245, %v2245
        %v2438 = vmul.f32 %v2246, %v2246
        %v2439 = vmul.f32 %v2247, %v2247
        %v2440 = vmul.f32 %v2248, %v2248
        %v2441 = vadd.f32 %v2377, %v2378
        %2442 = vadd.xlane.f32.xlu0 %v2441
        %v2443 = vpop.xlane.xlu0 %2442
        %v2444 = vadd.f32 %v2379, %v2380
        %2445 = vadd.xlane.f32.xlu0 %v2444
        %v2446 = vpop.xlane.xlu0 %2445
        %v2447 = vadd.f32 %v2381, %v2382
        %2448 = vadd.xlane.f32.xlu0 %v2447
        %v2449 = vpop.xlane.xlu0 %2448
        %v2450 = vadd.f32 %v2383, %v2384
        %2451 = vadd.xlane.f32.xlu0 %v2450
        %v2452 = vpop.xlane.xlu0 %2451
        %v2453 = vadd.f32 %v2385, %v2386
        %2454 = vadd.xlane.f32.xlu0 %v2453
        %v2455 = vpop.xlane.xlu0 %2454
        %v2456 = vadd.f32 %v2387, %v2388
        %2457 = vadd.xlane.f32.xlu0 %v2456
        %v2458 = vpop.xlane.xlu0 %2457
        %v2459 = vadd.f32 %v2389, %v2390
        %2460 = vadd.xlane.f32.xlu0 %v2459
        %v2461 = vpop.xlane.xlu0 %2460
        %v2462 = vadd.f32 %v2391, %v2392
        %2463 = vadd.xlane.f32.xlu0 %v2462
        %v2464 = vpop.xlane.xlu0 %2463
        %v2465 = vadd.f32 %v2393, %v2394
        %2466 = vadd.xlane.f32.xlu0 %v2465
        %v2467 = vpop.xlane.xlu0 %2466
        %v2468 = vadd.f32 %v2395, %v2396
        %2469 = vadd.xlane.f32.xlu0 %v2468
        %v2470 = vpop.xlane.xlu0 %2469
        %v2471 = vadd.f32 %v2397, %v2398
        %2472 = vadd.xlane.f32.xlu0 %v2471
        %v2473 = vpop.xlane.xlu0 %2472
        %v2474 = vadd.f32 %v2399, %v2400
        %2475 = vadd.xlane.f32.xlu0 %v2474
        %v2476 = vpop.xlane.xlu0 %2475
        %v2477 = vadd.f32 %v2401, %v2402
        %2478 = vadd.xlane.f32.xlu0 %v2477
        %v2479 = vpop.xlane.xlu0 %2478
        %v2480 = vadd.f32 %v2403, %v2404
        %2481 = vadd.xlane.f32.xlu0 %v2480
        %v2482 = vpop.xlane.xlu0 %2481
        %v2483 = vadd.f32 %v2405, %v2406
        %2484 = vadd.xlane.f32.xlu0 %v2483
        %v2485 = vpop.xlane.xlu0 %2484
        %v2486 = vadd.f32 %v2407, %v2408
        %2487 = vadd.xlane.f32.xlu0 %v2486
        %v2488 = vpop.xlane.xlu0 %2487
        %v2489 = vadd.f32 %v2409, %v2410
        %2490 = vadd.xlane.f32.xlu0 %v2489
        %v2491 = vpop.xlane.xlu0 %2490
        %v2492 = vadd.f32 %v2411, %v2412
        %2493 = vadd.xlane.f32.xlu0 %v2492
        %v2494 = vpop.xlane.xlu0 %2493
        %v2495 = vadd.f32 %v2413, %v2414
        %2496 = vadd.xlane.f32.xlu0 %v2495
        %v2497 = vpop.xlane.xlu0 %2496
        %v2498 = vadd.f32 %v2415, %v2416
        %2499 = vadd.xlane.f32.xlu0 %v2498
        %v2500 = vpop.xlane.xlu0 %2499
        %v2501 = vadd.f32 %v2417, %v2418
        %2502 = vadd.xlane.f32.xlu0 %v2501
        %v2503 = vpop.xlane.xlu0 %2502
        %v2504 = vadd.f32 %v2419, %v2420
        %2505 = vadd.xlane.f32.xlu0 %v2504
        %v2506 = vpop.xlane.xlu0 %2505
        %v2507 = vadd.f32 %v2421, %v2422
        %2508 = vadd.xlane.f32.xlu0 %v2507
        %v2509 = vpop.xlane.xlu0 %2508
        %v2510 = vadd.f32 %v2423, %v2424
        %2511 = vadd.xlane.f32.xlu0 %v2510
        %v2512 = vpop.xlane.xlu0 %2511
        %v2513 = vadd.f32 %v2425, %v2426
        %2514 = vadd.xlane.f32.xlu0 %v2513
        %v2515 = vpop.xlane.xlu0 %2514
        %v2516 = vadd.f32 %v2427, %v2428
        %2517 = vadd.xlane.f32.xlu0 %v2516
        %v2518 = vpop.xlane.xlu0 %2517
        %v2519 = vadd.f32 %v2429, %v2430
        %2520 = vadd.xlane.f32.xlu0 %v2519
        %v2521 = vpop.xlane.xlu0 %2520
        %v2522 = vadd.f32 %v2431, %v2432
        %2523 = vadd.xlane.f32.xlu0 %v2522
        %v2524 = vpop.xlane.xlu0 %2523
        %v2525 = vadd.f32 %v2433, %v2434
        %2526 = vadd.xlane.f32.xlu0 %v2525
        %v2527 = vpop.xlane.xlu0 %2526
        %v2528 = vadd.f32 %v2435, %v2436
        %2529 = vadd.xlane.f32.xlu0 %v2528
        %v2530 = vpop.xlane.xlu0 %2529
        %v2531 = vadd.f32 %v2437, %v2438
        %2532 = vadd.xlane.f32.xlu0 %v2531
        %v2533 = vpop.xlane.xlu0 %2532
        %v2534 = vadd.f32 %v2439, %v2440
        %2535 = vadd.xlane.f32.xlu0 %v2534
        %v2536 = vpop.xlane.xlu0 %2535
        %v2537 = vmul.f32 %v2443, 0.005
        %v2538 = vmul.f32 %v2446, 0.005
        %v2539 = vmul.f32 %v2449, 0.005
        %v2540 = vmul.f32 %v2452, 0.005
        %v2541 = vmul.f32 %v2455, 0.005
        %v2542 = vmul.f32 %v2458, 0.005
        %v2543 = vmul.f32 %v2461, 0.005
        %v2544 = vmul.f32 %v2464, 0.005
        %v2545 = vmul.f32 %v2467, 0.005
        %v2546 = vmul.f32 %v2470, 0.005
        %v2547 = vmul.f32 %v2473, 0.005
        %v2548 = vmul.f32 %v2476, 0.005
        %v2549 = vmul.f32 %v2479, 0.005
        %v2550 = vmul.f32 %v2482, 0.005
        %v2551 = vmul.f32 %v2485, 0.005
        %v2552 = vmul.f32 %v2488, 0.005
        %v2553 = vmul.f32 %v2491, 0.005
        %v2554 = vmul.f32 %v2494, 0.005
        %v2555 = vmul.f32 %v2497, 0.005
        %v2556 = vmul.f32 %v2500, 0.005
        %v2557 = vmul.f32 %v2503, 0.005
        %v2558 = vmul.f32 %v2506, 0.005
        %v2559 = vmul.f32 %v2509, 0.005
        %v2560 = vmul.f32 %v2512, 0.005
        %v2561 = vmul.f32 %v2515, 0.005
        %v2562 = vmul.f32 %v2518, 0.005
        %v2563 = vmul.f32 %v2521, 0.005
        %v2564 = vmul.f32 %v2524, 0.005
        %v2565 = vmul.f32 %v2527, 0.005
        %v2566 = vmul.f32 %v2530, 0.005
        %v2567 = vmul.f32 %v2533, 0.005
        %v2568 = vmul.f32 %v2536, 0.005
        %v2569 = vmul.f32 %v2345, %v2345
        %v2570 = vmul.f32 %v2346, %v2346
        %v2571 = vmul.f32 %v2347, %v2347
        %v2572 = vmul.f32 %v2348, %v2348
        %v2573 = vmul.f32 %v2349, %v2349
        %v2574 = vmul.f32 %v2350, %v2350
        %v2575 = vmul.f32 %v2351, %v2351
        %v2576 = vmul.f32 %v2352, %v2352
        %v2577 = vmul.f32 %v2353, %v2353
        %v2578 = vmul.f32 %v2354, %v2354
        %v2579 = vmul.f32 %v2355, %v2355
        %v2580 = vmul.f32 %v2356, %v2356
        %v2581 = vmul.f32 %v2357, %v2357
        %v2582 = vmul.f32 %v2358, %v2358
        %v2583 = vmul.f32 %v2359, %v2359
        %v2584 = vmul.f32 %v2360, %v2360
        %v2585 = vmul.f32 %v2361, %v2361
        %v2586 = vmul.f32 %v2362, %v2362
        %v2587 = vmul.f32 %v2363, %v2363
        %v2588 = vmul.f32 %v2364, %v2364
        %v2589 = vmul.f32 %v2365, %v2365
        %v2590 = vmul.f32 %v2366, %v2366
        %v2591 = vmul.f32 %v2367, %v2367
        %v2592 = vmul.f32 %v2368, %v2368
        %v2593 = vmul.f32 %v2369, %v2369
        %v2594 = vmul.f32 %v2370, %v2370
        %v2595 = vmul.f32 %v2371, %v2371
        %v2596 = vmul.f32 %v2372, %v2372
        %v2597 = vmul.f32 %v2373, %v2373
        %v2598 = vmul.f32 %v2374, %v2374
        %v2599 = vmul.f32 %v2375, %v2375
        %v2600 = vmul.f32 %v2376, %v2376
        %v2601 = vsub.f32 %v2537, %v2569
        %v2602 = vsub.f32 %v2538, %v2570
        %v2603 = vsub.f32 %v2539, %v2571
        %v2604 = vsub.f32 %v2540, %v2572
        %v2605 = vsub.f32 %v2541, %v2573
        %v2606 = vsub.f32 %v2542, %v2574
        %v2607 = vsub.f32 %v2543, %v2575
        %v2608 = vsub.f32 %v2544, %v2576
        %v2609 = vsub.f32 %v2545, %v2577
        %v2610 = vsub.f32 %v2546, %v2578
        %v2611 = vsub.f32 %v2547, %v2579
        %v2612 = vsub.f32 %v2548, %v2580
        %v2613 = vsub.f32 %v2549, %v2581
        %v2614 = vsub.f32 %v2550, %v2582
        %v2615 = vsub.f32 %v2551, %v2583
        %v2616 = vsub.f32 %v2552, %v2584
        %v2617 = vsub.f32 %v2553, %v2585
        %v2618 = vsub.f32 %v2554, %v2586
        %v2619 = vsub.f32 %v2555, %v2587
        %v2620 = vsub.f32 %v2556, %v2588
        %v2621 = vsub.f32 %v2557, %v2589
        %v2622 = vsub.f32 %v2558, %v2590
        %v2623 = vsub.f32 %v2559, %v2591
        %v2624 = vsub.f32 %v2560, %v2592
        %v2625 = vsub.f32 %v2561, %v2593
        %v2626 = vsub.f32 %v2562, %v2594
        %v2627 = vsub.f32 %v2563, %v2595
        %v2628 = vsub.f32 %v2564, %v2596
        %v2629 = vsub.f32 %v2565, %v2597
        %v2630 = vsub.f32 %v2566, %v2598
        %v2631 = vsub.f32 %v2567, %v2599
        %v2632 = vsub.f32 %v2568, %v2600
        %v2633 = vadd.f32 %v2601, 1e-05
        %v2634 = vadd.f32 %v2602, 1e-05
        %v2635 = vadd.f32 %v2603, 1e-05
        %v2636 = vadd.f32 %v2604, 1e-05
        %v2637 = vadd.f32 %v2605, 1e-05
        %v2638 = vadd.f32 %v2606, 1e-05
        %v2639 = vadd.f32 %v2607, 1e-05
        %v2640 = vadd.f32 %v2608, 1e-05
        %v2641 = vadd.f32 %v2609, 1e-05
        %v2642 = vadd.f32 %v2610, 1e-05
        %v2643 = vadd.f32 %v2611, 1e-05
        %v2644 = vadd.f32 %v2612, 1e-05
        %v2645 = vadd.f32 %v2613, 1e-05
        %v2646 = vadd.f32 %v2614, 1e-05
        %v2647 = vadd.f32 %v2615, 1e-05
        %v2648 = vadd.f32 %v2616, 1e-05
        %v2649 = vadd.f32 %v2617, 1e-05
        %v2650 = vadd.f32 %v2618, 1e-05
        %v2651 = vadd.f32 %v2619, 1e-05
        %v2652 = vadd.f32 %v2620, 1e-05
        %v2653 = vadd.f32 %v2621, 1e-05
        %v2654 = vadd.f32 %v2622, 1e-05
        %v2655 = vadd.f32 %v2623, 1e-05
        %v2656 = vadd.f32 %v2624, 1e-05
        %v2657 = vadd.f32 %v2625, 1e-05
        %v2658 = vadd.f32 %v2626, 1e-05
        %v2659 = vadd.f32 %v2627, 1e-05
        %v2660 = vadd.f32 %v2628, 1e-05
        %v2661 = vadd.f32 %v2629, 1e-05
        %v2662 = vadd.f32 %v2630, 1e-05
        %v2663 = vadd.f32 %v2631, 1e-05
        %v2664 = vadd.f32 %v2632, 1e-05
        %v2665 = vrsqrt.pop %v2633
        %v2666 = vrsqrt.pop %v2634
        %v2667 = vrsqrt.pop %v2635
        %v2668 = vrsqrt.pop %v2636
        %v2669 = vrsqrt.pop %v2637
        %v2670 = vrsqrt.pop %v2638
        %v2671 = vrsqrt.pop %v2639
        %v2672 = vrsqrt.pop %v2640
        %v2673 = vrsqrt.pop %v2641
        %v2674 = vrsqrt.pop %v2642
        %v2675 = vrsqrt.pop %v2643
        %v2676 = vrsqrt.pop %v2644
        %v2677 = vrsqrt.pop %v2645
        %v2678 = vrsqrt.pop %v2646
        %v2679 = vrsqrt.pop %v2647
        %v2680 = vrsqrt.pop %v2648
        %v2681 = vrsqrt.pop %v2649
        %v2682 = vrsqrt.pop %v2650
        %v2683 = vrsqrt.pop %v2651
        %v2684 = vrsqrt.pop %v2652
        %v2685 = vrsqrt.pop %v2653
        %v2686 = vrsqrt.pop %v2654
        %v2687 = vrsqrt.pop %v2655
        %v2688 = vrsqrt.pop %v2656
        %v2689 = vrsqrt.pop %v2657
        %v2690 = vrsqrt.pop %v2658
        %v2691 = vrsqrt.pop %v2659
        %v2692 = vrsqrt.pop %v2660
        %v2693 = vrsqrt.pop %v2661
        %v2694 = vrsqrt.pop %v2662
        %v2695 = vrsqrt.pop %v2663
        %v2696 = vrsqrt.pop %v2664
        %v2697 = vsub.f32 %v2185, %v2345
        %v2698 = vsub.f32 %v2186, %v2345
        %v2699 = vsub.f32 %v2187, %v2346
        %v2700 = vsub.f32 %v2188, %v2346
        %v2701 = vsub.f32 %v2189, %v2347
        %v2702 = vsub.f32 %v2190, %v2347
        %v2703 = vsub.f32 %v2191, %v2348
        %v2704 = vsub.f32 %v2192, %v2348
        %v2705 = vsub.f32 %v2193, %v2349
        %v2706 = vsub.f32 %v2194, %v2349
        %v2707 = vsub.f32 %v2195, %v2350
        %v2708 = vsub.f32 %v2196, %v2350
        %v2709 = vsub.f32 %v2197, %v2351
        %v2710 = vsub.f32 %v2198, %v2351
        %v2711 = vsub.f32 %v2199, %v2352
        %v2712 = vsub.f32 %v2200, %v2352
        %v2713 = vsub.f32 %v2201, %v2353
        %v2714 = vsub.f32 %v2202, %v2353
        %v2715 = vsub.f32 %v2203, %v2354
        %v2716 = vsub.f32 %v2204, %v2354
        %v2717 = vsub.f32 %v2205, %v2355
        %v2718 = vsub.f32 %v2206, %v2355
        %v2719 = vsub.f32 %v2207, %v2356
        %v2720 = vsub.f32 %v2208, %v2356
        %v2721 = vsub.f32 %v2209, %v2357
        %v2722 = vsub.f32 %v2210, %v2357
        %v2723 = vsub.f32 %v2211, %v2358
        %v2724 = vsub.f32 %v2212, %v2358
        %v2725 = vsub.f32 %v2213, %v2359
        %v2726 = vsub.f32 %v2214, %v2359
        %v2727 = vsub.f32 %v2215, %v2360
        %v2728 = vsub.f32 %v2216, %v2360
        %v2729 = vsub.f32 %v2217, %v2361
        %v2730 = vsub.f32 %v2218, %v2361
        %v2731 = vsub.f32 %v2219, %v2362
        %v2732 = vsub.f32 %v2220, %v2362
        %v2733 = vsub.f32 %v2221, %v2363
        %v2734 = vsub.f32 %v2222, %v2363
        %v2735 = vsub.f32 %v2223, %v2364
        %v2736 = vsub.f32 %v2224, %v2364
        %v2737 = vsub.f32 %v2225, %v2365
        %v2738 = vsub.f32 %v2226, %v2365
        %v2739 = vsub.f32 %v2227, %v2366
        %v2740 = vsub.f32 %v2228, %v2366
        %v2741 = vsub.f32 %v2229, %v2367
        %v2742 = vsub.f32 %v2230, %v2367
        %v2743 = vsub.f32 %v2231, %v2368
        %v2744 = vsub.f32 %v2232, %v2368
        %v2745 = vsub.f32 %v2233, %v2369
        %v2746 = vsub.f32 %v2234, %v2369
        %v2747 = vsub.f32 %v2235, %v2370
        %v2748 = vsub.f32 %v2236, %v2370
        %v2749 = vsub.f32 %v2237, %v2371
        %v2750 = vsub.f32 %v2238, %v2371
        %v2751 = vsub.f32 %v2239, %v2372
        %v2752 = vsub.f32 %v2240, %v2372
        %v2753 = vsub.f32 %v2241, %v2373
        %v2754 = vsub.f32 %v2242, %v2373
        %v2755 = vsub.f32 %v2243, %v2374
        %v2756 = vsub.f32 %v2244, %v2374
        %v2757 = vsub.f32 %v2245, %v2375
        %v2758 = vsub.f32 %v2246, %v2375
        %v2759 = vsub.f32 %v2247, %v2376
        %v2760 = vsub.f32 %v2248, %v2376
        %v2761 = vmul.f32 %v2697, %v2665
        %v2762 = vmul.f32 %v2698, %v2665
        %v2763 = vmul.f32 %v2699, %v2666
        %v2764 = vmul.f32 %v2700, %v2666
        %v2765 = vmul.f32 %v2701, %v2667
        %v2766 = vmul.f32 %v2702, %v2667
        %v2767 = vmul.f32 %v2703, %v2668
        %v2768 = vmul.f32 %v2704, %v2668
        %v2769 = vmul.f32 %v2705, %v2669
        %v2770 = vmul.f32 %v2706, %v2669
        %v2771 = vmul.f32 %v2707, %v2670
        %v2772 = vmul.f32 %v2708, %v2670
        %v2773 = vmul.f32 %v2709, %v2671
        %v2774 = vmul.f32 %v2710, %v2671
        %v2775 = vmul.f32 %v2711, %v2672
        %v2776 = vmul.f32 %v2712, %v2672
        %v2777 = vmul.f32 %v2713, %v2673
        %v2778 = vmul.f32 %v2714, %v2673
        %v2779 = vmul.f32 %v2715, %v2674
        %v2780 = vmul.f32 %v2716, %v2674
        %v2781 = vmul.f32 %v2717, %v2675
        %v2782 = vmul.f32 %v2718, %v2675
        %v2783 = vmul.f32 %v2719, %v2676
        %v2784 = vmul.f32 %v2720, %v2676
        %v2785 = vmul.f32 %v2721, %v2677
        %v2786 = vmul.f32 %v2722, %v2677
        %v2787 = vmul.f32 %v2723, %v2678
        %v2788 = vmul.f32 %v2724, %v2678
        %v2789 = vmul.f32 %v2725, %v2679
        %v2790 = vmul.f32 %v2726, %v2679
        %v2791 = vmul.f32 %v2727, %v2680
        %v2792 = vmul.f32 %v2728, %v2680
        %v2793 = vmul.f32 %v2729, %v2681
        %v2794 = vmul.f32 %v2730, %v2681
        %v2795 = vmul.f32 %v2731, %v2682
        %v2796 = vmul.f32 %v2732, %v2682
        %v2797 = vmul.f32 %v2733, %v2683
        %v2798 = vmul.f32 %v2734, %v2683
        %v2799 = vmul.f32 %v2735, %v2684
        %v2800 = vmul.f32 %v2736, %v2684
        %v2801 = vmul.f32 %v2737, %v2685
        %v2802 = vmul.f32 %v2738, %v2685
        %v2803 = vmul.f32 %v2739, %v2686
        %v2804 = vmul.f32 %v2740, %v2686
        %v2805 = vmul.f32 %v2741, %v2687
        %v2806 = vmul.f32 %v2742, %v2687
        %v2807 = vmul.f32 %v2743, %v2688
        %v2808 = vmul.f32 %v2744, %v2688
        %v2809 = vmul.f32 %v2745, %v2689
        %v2810 = vmul.f32 %v2746, %v2689
        %v2811 = vmul.f32 %v2747, %v2690
        %v2812 = vmul.f32 %v2748, %v2690
        %v2813 = vmul.f32 %v2749, %v2691
        %v2814 = vmul.f32 %v2750, %v2691
        %v2815 = vmul.f32 %v2751, %v2692
        %v2816 = vmul.f32 %v2752, %v2692
        %v2817 = vmul.f32 %v2753, %v2693
        %v2818 = vmul.f32 %v2754, %v2693
        %v2819 = vmul.f32 %v2755, %v2694
        %v2820 = vmul.f32 %v2756, %v2694
        %v2821 = vmul.f32 %v2757, %v2695
        %v2822 = vmul.f32 %v2758, %v2695
        %v2823 = vmul.f32 %v2759, %v2696
        %v2824 = vmul.f32 %v2760, %v2696
        %v2825 = vld [vmem:[#allocation8] sm:$0x3]
        %v2826 = vld [vmem:[#allocation2] sm:$0x1]
        %2828 = vset.pattern.permute.xlu0 0
        %2829 = vperm.xlu0 %2828, %v2826
        %v2830 = vpop.permute.xlu0 %2829
        %v2832 = vlaneseq
        %v2833 = vshrl.u32 %v2832, 7
        %v2834 = vsub.s32 0, %v2833
        %v2835 = vrot.slane %v2830, %v2834
        %v2837 = vlaneseq
        %v2838 = vshrl.u32 %v2837, 7
        %v2839 = vsub.s32 0, %v2838
        %v2840 = vrot.slane %v2825, %v2839
        %v2841 = vlaneseq
        %v2842 = vshrl.u32 %v2841, 7
        %v2843 = vsub.s32 1, %v2842
        %v2844 = vrot.slane %v2825, %v2843
        %2847 = vmatprep.subr.mxu0 %v2792
        %2848 = vmatpush1.xpose.msra.mxu0 %v2791
        %2849 = vmatprep.subr.mxu0 %v2790
        %2850 = vmatpush1.xpose.msra.mxu0 %v2789
        %2851 = vmatprep.subr.mxu0 %v2788
        %2852 = vmatpush1.xpose.msra.mxu0 %v2787
        %2853 = vmatprep.subr.mxu0 %v2786
        %2854 = vmatpush1.xpose.msra.mxu0 %v2785
        %2855 = vmatprep.subr.mxu0 %v2784
        %2856 = vmatpush1.xpose.msra.mxu0 %v2783
        %2857 = vmatprep.subr.mxu0 %v2782
        %2858 = vmatpush1.xpose.msra.mxu0 %v2781
        %2859 = vmatprep.subr.mxu0 %v2780
        %2860 = vmatpush1.xpose.msra.mxu0 %v2779
        %2861 = vmatprep.subr.mxu0 %v2778
        %2862 = vmatpush1.xpose.msra.mxu0 %v2777
        %2863 = vmatprep.subr.mxu0 %v2776
        %2864 = vmatpush1.xpose.msra.mxu0 %v2775
        %2865 = vmatprep.subr.mxu0 %v2774
        %2866 = vmatpush1.xpose.msra.mxu0 %v2773
        %2867 = vmatprep.subr.mxu0 %v2772
        %2868 = vmatpush1.xpose.msra.mxu0 %v2771
        %2869 = vmatprep.subr.mxu0 %v2770
        %2870 = vmatpush1.xpose.msra.mxu0 %v2769
        %2871 = vmatprep.subr.mxu0 %v2768
        %2872 = vmatpush1.xpose.msra.mxu0 %v2767
        %2873 = vmatprep.subr.mxu0 %v2766
        %2874 = vmatpush1.xpose.msra.mxu0 %v2765
        %2875 = vmatprep.subr.mxu0 %v2764
        %2876 = vmatpush1.xpose.msra.mxu0 %v2763
        %2877 = vmatprep.subr.mxu0 %v2762
        %2878 = vmatpush1.xpose.msra.mxu0 %v2761
        %2879 = vmatprep.subr.mxu0 %v2824
        %2880 = vmatpush2.xpose.msra.mxu0 %v2823
        %2881 = vmatprep.subr.mxu0 %v2822
        %2882 = vmatpush2.xpose.msra.mxu0 %v2821
        %2883 = vmatprep.subr.mxu0 %v2820
        %2884 = vmatpush2.xpose.msra.mxu0 %v2819
        %2885 = vmatprep.subr.mxu0 %v2818
        %2886 = vmatpush2.xpose.msra.mxu0 %v2817
        %2887 = vmatprep.subr.mxu0 %v2816
        %2888 = vmatpush2.xpose.msra.mxu0 %v2815
        %2889 = vmatprep.subr.mxu0 %v2814
        %2890 = vmatpush2.xpose.msra.mxu0 %v2813
        %2891 = vmatprep.subr.mxu0 %v2812
        %2892 = vmatpush2.xpose.msra.mxu0 %v2811
        %2893 = vmatprep.subr.mxu0 %v2810
        %2894 = vmatpush2.xpose.msra.mxu0 %v2809
        %2895 = vmatprep.subr.mxu0 %v2808
        %2896 = vmatpush2.xpose.msra.mxu0 %v2807
        %2897 = vmatprep.subr.mxu0 %v2806
        %2898 = vmatpush2.xpose.msra.mxu0 %v2805
        %2899 = vmatprep.subr.mxu0 %v2804
        %2900 = vmatpush2.xpose.msra.mxu0 %v2803
        %2901 = vmatprep.subr.mxu0 %v2802
        %2902 = vmatpush2.xpose.msra.mxu0 %v2801
        %2903 = vmatprep.subr.mxu0 %v2800
        %2904 = vmatpush2.xpose.msra.mxu0 %v2799
        %2905 = vmatprep.subr.mxu0 %v2798
        %2906 = vmatpush2.xpose.msra.mxu0 %v2797
        %2907 = vmatprep.subr.mxu0 %v2796
        %2908 = vmatpush2.xpose.msra.mxu0 %v2795
        %2909 = vmatprep.subr.mxu0 %v2794
        %2910 = vmatpush2.xpose.msra.mxu0 %v2793
        %2911 = vmatprep.mubr.f32.mxu0 %v2844
        %2912 = vmatmul.mubr.f32.gmra.mxu0 %v2840
        %v2913 = vpop.f32.mrf.mxu0
        %v2914 = vadd.f32 %v2835, %v2913
        %v2915 = vpop.f32.mrf.mxu0
        %v2916 = vadd.f32 %v2835, %v2915
        %2917 = vdwg.mxu0
        %v2918 = vmul.f32 %v2914, 0.5
        %v2919 = vmul.f32 %v2916, 0.5
        %v2920 = vtanh.pop %v2918
        %v2921 = vtanh.pop %v2919
        %v2922 = vadd.f32 %v2920, 1.0
        %v2923 = vadd.f32 %v2921, 1.0
        %v2924 = vmul.f32 %v2922, 0.5
        %v2925 = vmul.f32 %v2923, 0.5
        %v2928 = vcombine.low %v2924, %v2925
        %v2930 = vunpack.c.l.s4 1966171168
        %v2931 = vunpack.c.0.s8 %v2930
        %v2932 = vlaneseq
        %v2933 = vshrl.u32 %v2932, 7
        %v2934 = vsub.s32 %v2931, %v2933
        %v2935 = vrot.slane %v2928, %v2934
        %v2937 = vunpack.c.l.s4 1966171168
        %v2938 = vunpack.c.0.s8 %v2937
        %v2939 = vlaneseq
        %v2940 = vshrl.u32 %v2939, 7
        %v2941 = vsub.s32 %v2938, %v2940
        %v2942 = vrot.slane %v2935, %v2941
        %v2944 = vlaneseq
        %vm2945 = vcmp.ge.s32.totalorder %v2944, 0
        %vm2946 = vcmp.lt.s32.totalorder %v2944, 256
        %vm2947 = vmand %vm2945, %vm2946
        %2948 = vst.msk [vmem:[%s298] sm:$0x3] %vm2947, %v2942
        %p2949 = scmp.lt.s32.totalorder %s23, 1
        %s2950 = scalar_select %p2949, %s23, 1
        %s2951 = smul.addr %s2950, 2
        %s2952 = scalar_lea.vmem %s5, %s2951
        // Predicated region
        $region57: #{discriminator_forward.1} parent=39 // pred_check
          %p2953 = pneg %p151
        $region58: #{discriminator_forward.1} parent=39 // pred_check_branch
          %2955 = sbr.rel (%p2953) target = $region60
        $region59: #{discriminator_forward.1} parent=39 // pred_region
          _
        $region60: #{discriminator_forward.1} parent=39 // pred_fallthru
          _
      $region40: #{discriminator_forward.1} parent=5 // pred_fallthru
        _
      %p2956 = scmp.le.s32.totalorder 2, %s18
      // Predicated region
      $region61: #{discriminator_forward.1} parent=5 // pred_check
        %p2957 = pneg %p2956
      $region62: #{discriminator_forward.1} parent=5 // pred_check_branch
        %2959 = sbr.rel (%p2957) target = $region64
      $region63: #{discriminator_forward.1} parent=5 // pred_region
        %s2960 = ssub.s32 %s18, 2
        // Predicated region
        $region65: #{discriminator_forward.1} parent=63 // pred_check
          %p2961 = pneg %p157
        $region66: #{discriminator_forward.1} parent=63 // pred_check_branch
          %2963 = sbr.rel (%p2961) target = $region68
        $region67: #{discriminator_forward.1} parent=63 // pred_region
          %p2964 = scmp.lt.s32.totalorder %s24, 1
          %s2965 = scalar_select %p2964, %s24, 1
          %s2966 = smul.addr %s2965, 2
          %s2967 = scalar_lea.vmem %s5, %s2966
        $region68: #{discriminator_forward.1} parent=63 // pred_fallthru
          _
      $region64: #{discriminator_forward.1} parent=5 // pred_fallthru
        _
    $region6: #{discriminator_forward.1} parent=1 // loop_footer
      %s22 = sadd.s32 1, %s18
    $region7: #{discriminator_forward.1} parent=1 // loop_footer_branch
      %17 = sbr.rel target = $region3
    $region8: #{discriminator_forward.1} parent=1 // loop_exit
      _
    %2968 = vsyncpa [#allocation4], 1
    %s2969 = scalar_lea.sflag [#allocation4], 1
    %2970 = vsyncpa %s2969, 1
    %2971 = vsyncpa [#allocation6], 1
    %2972 = vsyncpa [#allocation9], 1

</llo_original>
